<compile_context>
chip_gen: v7x
topology: tpu7x:2x2x1
jax: 0.10.0
libtpu: 0.0.40
codegen_flags: <defaults>
</compile_context>

<pallas_src>
import jax
import jax.numpy as jnp
from jax import lax
from jax.experimental import pallas as pl
from jax.experimental.pallas import tpu as pltpu


def _fused_kernel(pooled_ref, x_ref, wpack_ref, bpack_ref, weff_ref, out_ref):
    """Per-batch fused channel attention.

    pooled_ref : (1, C, 1)            spatially pooled x1
    x_ref      : (1, C, N)            x with spatial dims flattened
    wpack_ref  : (3*Ci, C)            [theta_w ; phi_w ; g_w]
    bpack_ref  : (3*Ci + C, 1)        [theta_b ; phi_b ; g_b ; b_eff]
    weff_ref   : (C, Ci)              output conv weight with BN folded in
    out_ref    : (1, C, Q, Ci)        output, row-major == (1, C, H*W)
    """
    ci = weff_ref.shape[1]
    q = out_ref.shape[2]

    pooled = pooled_ref[0]                      # (C, 1)
    wp = wpack_ref[...]                         # (3Ci, C)
    bp = bpack_ref[...]                         # (3Ci + C, 1)

    # theta & phi 1x1 convs on the pooled vector as one packed matvec.
    tp = jnp.dot(wp[: 2 * ci], pooled,
                 preferred_element_type=jnp.float32) + bp[: 2 * ci]   # (2Ci, 1)
    theta = tp[:ci]                             # (Ci, 1)
    phi = tp[ci: 2 * ci]                        # (Ci, 1)

    # f[i, j] = phi[i] * theta[j]; softmax over j (last dim).
    f = phi * jnp.transpose(theta)              # (Ci, Ci)
    f = f - jnp.max(f, axis=-1, keepdims=True)
    e = jnp.exp(f)
    f_div_c = e / jnp.sum(e, axis=-1, keepdims=True)

    # Fold the g 1x1-conv into the attention weights:
    #   W_comb = f_div_C^T @ g_w   (Ci, C)
    #   b_comb = f_div_C^T @ g_b   (Ci, 1)
    # dot_general contracting dim 0 of f_div_c (no explicit transpose needed).
    g_w = wp[2 * ci: 3 * ci]                    # (Ci, C)
    g_b = bp[2 * ci: 3 * ci]                    # (Ci, 1)
    dn = (((0,), (0,)), ((), ()))
    w_comb = lax.dot_general(f_div_c, g_w, dn,
                             preferred_element_type=jnp.float32)      # (Ci, C)
    b_comb = lax.dot_general(f_div_c, g_b, dn,
                             preferred_element_type=jnp.float32)      # (Ci, 1)

    # The only N-wide matmul:  f1 = W_comb @ x + b_comb.
    xb = x_ref[0]                               # (C, N)
    f1 = jnp.dot(w_comb, xb, preferred_element_type=jnp.float32) + b_comb  # (Ci, N)
    f1_t = jnp.transpose(f1)                    # (N, Ci)

    # permute(0,2,1).contiguous().view scramble fused with the W-conv (+BN):
    #   out[o, r*Ci + c] = sum_k w_eff[o, k] * f1_t[k*Q + r, c] + b_eff[o]
    # done as a broadcast multiply-accumulate over k (k == in_channels, small).
    w_eff = weff_ref[...]                       # (C, Ci)
    b_eff = bp[3 * ci:]                         # (C, 1)

    acc = b_eff[:, :, None] + w_eff[:, 0:1, None] * f1_t[0:q, :][None, :, :]
    for k in range(1, ci):
        acc = acc + w_eff[:, k: k + 1, None] * f1_t[k * q: (k + 1) * q, :][None, :, :]

    out_ref[0] = acc                            # (C, Q, Ci)


def channel_atten_1(x, x1, params):
    """Forward pass of Channel_Atten_1 (dimension=2, bn_layer=True, eval-mode BN)."""
    B, C, H, W = x.shape
    Ci = params["theta_w"].shape[0]
    N = H * W
    # TODO(synk): general H*W not divisible by inter_channels needs the unfused
    # permute+view fallback; not implemented here.
    assert N % Ci == 0, "fused kernel requires H*W % inter_channels == 0"
    Q = N // Ci

    # ---- trace-time parameter prep (tiny) ----
    # TODO(synk): BatchNorm is folded with running stats (eval mode); train-mode
    # batch statistics are not implemented.
    scale = params["bn_gamma"] * lax.rsqrt(params["bn_var"] + 1e-5)        # (C,1)
    w_eff = scale * params["w_w"]                                          # (C,Ci)
    b_eff = scale * (params["w_b"] - params["bn_mean"]) + params["bn_beta"]  # (C,1)

    w_pack = jnp.concatenate(
        [params["theta_w"], params["phi_w"], params["g_w"]], axis=0)       # (3Ci, C)
    b_pack = jnp.concatenate(
        [params["theta_b"], params["phi_b"], params["g_b"], b_eff], axis=0)  # (3Ci+C, 1)

    # AdaptiveAvgPool2d(1) on x1 in plain XLA: keeps the big x1 slab out of the kernel.
    pooled = jnp.mean(x1.reshape(B, C, -1), axis=-1, keepdims=True)        # (B, C, 1)

    xf = x.reshape(B, C, N)

    p_full = lambda b: (0, 0)   # whole-array parameter blocks

    # NOTE: for very large H*W (v7x 64 MiB VMEM), tile the spatial axis by adding
    # a grid dim over Q; at these sizes whole-row blocks fit comfortably.
    out = pl.pallas_call(
        _fused_kernel,
        out_shape=jax.ShapeDtypeStruct((B, C, Q, Ci), jnp.float32),
        grid=(B,),
        in_specs=[
            pl.BlockSpec((1, C, 1), lambda b: (b, 0, 0)),     # pooled x1
            pl.BlockSpec((1, C, N), lambda b: (b, 0, 0)),     # x
            pl.BlockSpec((3 * Ci, C), p_full),                # packed theta/phi/g weights
            pl.BlockSpec((3 * Ci + C, 1), p_full),            # packed biases (+ folded BN bias)
            pl.BlockSpec((C, Ci), p_full),                    # W conv weight with BN folded
        ],
        out_specs=pl.BlockSpec((1, C, Q, Ci), lambda b: (b, 0, 0, 0)),
        compiler_params=pltpu.CompilerParams(
            dimension_semantics=("parallel",),
        ),
    )(pooled, xf, w_pack, b_pack, w_eff)

    # (B, C, Q, Ci) is row-major identical to (B, C, H*W): free reshape.
    return out.reshape(B, C, H, W)


def _reference(x, x1, p):
    """Pure-JAX reference faithful to the PyTorch forward (eval-mode BN)."""
    B, C, H, W = x.shape
    Ci = p["theta_w"].shape[0]
    N = H * W
    pooled = x1.reshape(B, C, -1).mean(axis=-1)                       # (B, C)
    theta = pooled @ p["theta_w"].T + p["theta_b"][:, 0]              # (B, Ci)
    phi = pooled @ p["phi_w"].T + p["phi_b"][:, 0]                    # (B, Ci)
    f = phi[:, :, None] * theta[:, None, :]                           # (B, Ci, Ci)
    fdc = jax.nn.softmax(f, axis=-1)
    g_x = jnp.einsum("oc,bcn->bon", p["g_w"], x.reshape(B, C, N)) \
        + p["g_b"][:, 0][None, :, None]                               # (B, Ci, N)
    f1 = jnp.einsum("bij,bin->bjn", fdc, g_x)                         # f_div_C^T @ g_x
    y = jnp.transpose(f1, (0, 2, 1)).reshape(B, Ci, N)                # permute + view
    wy = jnp.einsum("ok,bkn->bon", p["w_w"], y) + p["w_b"][:, 0][None, :, None]
    inv = p["bn_gamma"][:, 0] / jnp.sqrt(p["bn_var"][:, 0] + 1e-5)
    out = (wy - p["bn_mean"][:, 0][None, :, None]) * inv[None, :, None] \
        + p["bn_beta"][:, 0][None, :, None]
    return out.reshape(B, C, H, W)


if __name__ == "__main__":
    key = jax.random.PRNGKey(0)
    B, C, H, W = 2, 8, 16, 16     # in_channels = 8, inter_channels = None -> Ci = 8
    Ci = C
    keys = jax.random.split(key, 14)

    def conv_init(kw, kb, out_c, in_c):
        bound = 1.0 / jnp.sqrt(jnp.float32(in_c))
        w = jax.random.uniform(kw, (out_c, in_c), jnp.float32, -bound, bound)
        b = jax.random.uniform(kb, (out_c, 1), jnp.float32, -bound, bound)
        return w, b

    tw, tb = conv_init(keys[0], keys[1], Ci, C)   # theta
    pw, pb = conv_init(keys[2], keys[3], Ci, C)   # phi
    gw, gb = conv_init(keys[4], keys[5], Ci, C)   # g
    ww, wb = conv_init(keys[6], keys[7], C, Ci)   # W[0] conv

    # NOTE: the module init zeroes BN gamma/beta (output would be identically 0);
    # use non-trivial "trained" BN stats so the run exercises the full path.
    params = {
        "theta_w": tw, "theta_b": tb,
        "phi_w": pw, "phi_b": pb,
        "g_w": gw, "g_b": gb,
        "w_w": ww, "w_b": wb,
        "bn_gamma": jax.random.normal(keys[10], (C, 1), jnp.float32),
        "bn_beta": jax.random.normal(keys[11], (C, 1), jnp.float32),
        "bn_mean": jax.random.normal(keys[12], (C, 1), jnp.float32),
        "bn_var": jax.random.uniform(keys[13], (C, 1), jnp.float32, 0.5, 1.5),
    }

    x = jax.random.normal(keys[8], (B, C, H, W), jnp.float32)
    x1 = jax.random.normal(keys[9], (B, C, H, W), jnp.float32)

    out = jax.jit(channel_atten_1)(x, x1, params)
    jax.block_until_ready(out)

    ref = _reference(x, x1, params)
    assert out.shape == (B, C, H, W) and out.dtype == jnp.float32
    max_err = float(jnp.max(jnp.abs(out - ref)))
    assert max_err < 1e-4, f"mismatch vs reference: max_err={max_err}"
    print("KERNEL_OK")
</pallas_src>

<mosaic_0001>
module attributes {stable_mosaic.version = 11 : i64} {
  func.func @_fused_kernel(%arg0: i32, %arg1: memref<1x8x1xf32, #tpu.memory_space<vmem>>, %arg2: memref<1x8x256xf32, #tpu.memory_space<vmem>>, %arg3: memref<24x8xf32, #tpu.memory_space<vmem>>, %arg4: memref<32x1xf32, #tpu.memory_space<vmem>>, %arg5: memref<8x8xf32, #tpu.memory_space<vmem>>, %arg6: memref<1x8x32x8xf32, #tpu.memory_space<vmem>>) attributes {dimension_semantics = [#tpu.dimension_semantics<parallel>], iteration_bounds = array<i64: 2>, scalar_prefetch = 0 : i64, scratch_operands = 0 : i64, tpu.core_type = #tpu.core_type<tc>, window_params = [{transform_indices = @transform_0, window_bounds = array<i64: 1, 8, 1>}, {transform_indices = @transform_1, window_bounds = array<i64: 1, 8, 256>}, {pipeline_mode = #tpu.pipeline_mode<synchronous>, transform_indices = @transform_2, window_bounds = array<i64: 24, 8>}, {pipeline_mode = #tpu.pipeline_mode<synchronous>, transform_indices = @transform_3, window_bounds = array<i64: 32, 1>}, {pipeline_mode = #tpu.pipeline_mode<synchronous>, transform_indices = @transform_4, window_bounds = array<i64: 8, 8>}, {transform_indices = @transform_5, window_bounds = array<i64: 1, 8, 32, 8>}]} {
    %c0 = arith.constant 0 : index
    %c0_0 = arith.constant 0 : index
    %c0_1 = arith.constant 0 : index
    %0 = vector.load %arg1[%c0, %c0_0, %c0_1] : memref<1x8x1xf32, #tpu.memory_space<vmem>>, vector<1x8x1xf32>
    %1 = vector.shape_cast %0 : vector<1x8x1xf32> to vector<8x1xf32>
    %c0_2 = arith.constant 0 : index
    %c0_3 = arith.constant 0 : index
    %2 = vector.load %arg3[%c0_2, %c0_3] : memref<24x8xf32, #tpu.memory_space<vmem>>, vector<24x8xf32>
    %c0_4 = arith.constant 0 : index
    %c0_5 = arith.constant 0 : index
    %3 = vector.load %arg4[%c0_4, %c0_5] : memref<32x1xf32, #tpu.memory_space<vmem>>, vector<32x1xf32>
    %4 = vector.extract_strided_slice %2 {offsets = [0, 0], sizes = [16, 8], strides = [1, 1]} : vector<24x8xf32> to vector<16x8xf32>
    %cst = arith.constant dense<0.000000e+00> : vector<16x1xf32>
    %5 = tpu.matmul %4, %1, %cst {dimension_numbers = #tpu.dot_dimension_numbers<[1], [0], [0], [1], [0, 0, 1, 1], [], []>} : vector<16x8xf32>, vector<8x1xf32>, vector<16x1xf32> -> vector<16x1xf32>
    %6 = vector.extract_strided_slice %3 {offsets = [0, 0], sizes = [16, 1], strides = [1, 1]} : vector<32x1xf32> to vector<16x1xf32>
    %7 = arith.addf %5, %6 : vector<16x1xf32>
    %8 = vector.extract_strided_slice %7 {offsets = [0, 0], sizes = [8, 1], strides = [1, 1]} : vector<16x1xf32> to vector<8x1xf32>
    %9 = vector.extract_strided_slice %7 {offsets = [8, 0], sizes = [8, 1], strides = [1, 1]} : vector<16x1xf32> to vector<8x1xf32>
    %10 = tpu.transpose %8, [1, 0] : vector<8x1xf32> -> vector<1x8xf32>
    %11 = vector.broadcast %9 : vector<8x1xf32> to vector<8x8xf32>
    %12 = vector.broadcast %10 : vector<1x8xf32> to vector<8x8xf32>
    %13 = arith.mulf %11, %12 : vector<8x8xf32>
    %cst_6 = arith.constant dense<0xFF800000> : vector<8xf32>
    %14 = vector.multi_reduction <maximumf>, %13, %cst_6 [1] : vector<8x8xf32> to vector<8xf32>
    %15 = vector.shape_cast %14 : vector<8xf32> to vector<8x1xf32>
    %16 = vector.broadcast %15 : vector<8x1xf32> to vector<8x8xf32>
    %17 = arith.subf %13, %16 : vector<8x8xf32>
    %18 = math.exp %17 : vector<8x8xf32>
    %cst_7 = arith.constant dense<0.000000e+00> : vector<8xf32>
    %19 = vector.multi_reduction <add>, %18, %cst_7 [1] : vector<8x8xf32> to vector<8xf32>
    %20 = vector.shape_cast %19 : vector<8xf32> to vector<8x1xf32>
    %21 = vector.broadcast %20 : vector<8x1xf32> to vector<8x8xf32>
    %22 = arith.divf %18, %21 : vector<8x8xf32>
    %23 = vector.extract_strided_slice %2 {offsets = [16, 0], sizes = [8, 8], strides = [1, 1]} : vector<24x8xf32> to vector<8x8xf32>
    %24 = vector.extract_strided_slice %3 {offsets = [16, 0], sizes = [8, 1], strides = [1, 1]} : vector<32x1xf32> to vector<8x1xf32>
    %cst_8 = arith.constant dense<0.000000e+00> : vector<8x8xf32>
    %25 = tpu.matmul %22, %23, %cst_8 {dimension_numbers = #tpu.dot_dimension_numbers<[0], [0], [1], [1], [0, 1, 1, 1], [], []>} : vector<8x8xf32>, vector<8x8xf32>, vector<8x8xf32> -> vector<8x8xf32>
    %cst_9 = arith.constant dense<0.000000e+00> : vector<8x1xf32>
    %26 = tpu.matmul %22, %24, %cst_9 {dimension_numbers = #tpu.dot_dimension_numbers<[0], [0], [1], [1], [0, 1, 1, 1], [], []>} : vector<8x8xf32>, vector<8x1xf32>, vector<8x1xf32> -> vector<8x1xf32>
    %c0_10 = arith.constant 0 : index
    %c0_11 = arith.constant 0 : index
    %c0_12 = arith.constant 0 : index
    %27 = vector.load %arg2[%c0_10, %c0_11, %c0_12] : memref<1x8x256xf32, #tpu.memory_space<vmem>>, vector<1x8x256xf32>
    %28 = vector.shape_cast %27 : vector<1x8x256xf32> to vector<8x256xf32>
    %cst_13 = arith.constant dense<0.000000e+00> : vector<8x256xf32>
    %29 = tpu.matmul %25, %28, %cst_13 {dimension_numbers = #tpu.dot_dimension_numbers<[1], [0], [0], [1], [0, 0, 1, 1], [], []>} : vector<8x8xf32>, vector<8x256xf32>, vector<8x256xf32> -> vector<8x256xf32>
    %30 = vector.broadcast %26 : vector<8x1xf32> to vector<8x256xf32>
    %31 = arith.addf %29, %30 : vector<8x256xf32>
    %32 = tpu.transpose %31, [1, 0] : vector<8x256xf32> -> vector<256x8xf32>
    %c0_14 = arith.constant 0 : index
    %c0_15 = arith.constant 0 : index
    %33 = vector.load %arg5[%c0_14, %c0_15] : memref<8x8xf32, #tpu.memory_space<vmem>>, vector<8x8xf32>
    %34 = vector.extract_strided_slice %3 {offsets = [24, 0], sizes = [8, 1], strides = [1, 1]} : vector<32x1xf32> to vector<8x1xf32>
    %35 = vector.shape_cast %34 : vector<8x1xf32> to vector<8x1x1xf32>
    %36 = vector.extract_strided_slice %33 {offsets = [0, 0], sizes = [8, 1], strides = [1, 1]} : vector<8x8xf32> to vector<8x1xf32>
    %37 = vector.shape_cast %36 : vector<8x1xf32> to vector<8x1x1xf32>
    %38 = vector.extract_strided_slice %32 {offsets = [0, 0], sizes = [32, 8], strides = [1, 1]} : vector<256x8xf32> to vector<32x8xf32>
    %39 = vector.shape_cast %38 : vector<32x8xf32> to vector<1x32x8xf32>
    %40 = vector.broadcast %37 : vector<8x1x1xf32> to vector<8x32x8xf32>
    %41 = vector.broadcast %39 : vector<1x32x8xf32> to vector<8x32x8xf32>
    %42 = arith.mulf %40, %41 : vector<8x32x8xf32>
    %43 = vector.broadcast %35 : vector<8x1x1xf32> to vector<8x32x8xf32>
    %44 = arith.addf %43, %42 : vector<8x32x8xf32>
    %45 = vector.extract_strided_slice %33 {offsets = [0, 1], sizes = [8, 1], strides = [1, 1]} : vector<8x8xf32> to vector<8x1xf32>
    %46 = vector.shape_cast %45 : vector<8x1xf32> to vector<8x1x1xf32>
    %47 = vector.extract_strided_slice %32 {offsets = [32, 0], sizes = [32, 8], strides = [1, 1]} : vector<256x8xf32> to vector<32x8xf32>
    %48 = vector.shape_cast %47 : vector<32x8xf32> to vector<1x32x8xf32>
    %49 = vector.broadcast %46 : vector<8x1x1xf32> to vector<8x32x8xf32>
    %50 = vector.broadcast %48 : vector<1x32x8xf32> to vector<8x32x8xf32>
    %51 = arith.mulf %49, %50 : vector<8x32x8xf32>
    %52 = arith.addf %44, %51 : vector<8x32x8xf32>
    %53 = vector.extract_strided_slice %33 {offsets = [0, 2], sizes = [8, 1], strides = [1, 1]} : vector<8x8xf32> to vector<8x1xf32>
    %54 = vector.shape_cast %53 : vector<8x1xf32> to vector<8x1x1xf32>
    %55 = vector.extract_strided_slice %32 {offsets = [64, 0], sizes = [32, 8], strides = [1, 1]} : vector<256x8xf32> to vector<32x8xf32>
    %56 = vector.shape_cast %55 : vector<32x8xf32> to vector<1x32x8xf32>
    %57 = vector.broadcast %54 : vector<8x1x1xf32> to vector<8x32x8xf32>
    %58 = vector.broadcast %56 : vector<1x32x8xf32> to vector<8x32x8xf32>
    %59 = arith.mulf %57, %58 : vector<8x32x8xf32>
    %60 = arith.addf %52, %59 : vector<8x32x8xf32>
    %61 = vector.extract_strided_slice %33 {offsets = [0, 3], sizes = [8, 1], strides = [1, 1]} : vector<8x8xf32> to vector<8x1xf32>
    %62 = vector.shape_cast %61 : vector<8x1xf32> to vector<8x1x1xf32>
    %63 = vector.extract_strided_slice %32 {offsets = [96, 0], sizes = [32, 8], strides = [1, 1]} : vector<256x8xf32> to vector<32x8xf32>
    %64 = vector.shape_cast %63 : vector<32x8xf32> to vector<1x32x8xf32>
    %65 = vector.broadcast %62 : vector<8x1x1xf32> to vector<8x32x8xf32>
    %66 = vector.broadcast %64 : vector<1x32x8xf32> to vector<8x32x8xf32>
    %67 = arith.mulf %65, %66 : vector<8x32x8xf32>
    %68 = arith.addf %60, %67 : vector<8x32x8xf32>
    %69 = vector.extract_strided_slice %33 {offsets = [0, 4], sizes = [8, 1], strides = [1, 1]} : vector<8x8xf32> to vector<8x1xf32>
    %70 = vector.shape_cast %69 : vector<8x1xf32> to vector<8x1x1xf32>
    %71 = vector.extract_strided_slice %32 {offsets = [128, 0], sizes = [32, 8], strides = [1, 1]} : vector<256x8xf32> to vector<32x8xf32>
    %72 = vector.shape_cast %71 : vector<32x8xf32> to vector<1x32x8xf32>
    %73 = vector.broadcast %70 : vector<8x1x1xf32> to vector<8x32x8xf32>
    %74 = vector.broadcast %72 : vector<1x32x8xf32> to vector<8x32x8xf32>
    %75 = arith.mulf %73, %74 : vector<8x32x8xf32>
    %76 = arith.addf %68, %75 : vector<8x32x8xf32>
    %77 = vector.extract_strided_slice %33 {offsets = [0, 5], sizes = [8, 1], strides = [1, 1]} : vector<8x8xf32> to vector<8x1xf32>
    %78 = vector.shape_cast %77 : vector<8x1xf32> to vector<8x1x1xf32>
    %79 = vector.extract_strided_slice %32 {offsets = [160, 0], sizes = [32, 8], strides = [1, 1]} : vector<256x8xf32> to vector<32x8xf32>
    %80 = vector.shape_cast %79 : vector<32x8xf32> to vector<1x32x8xf32>
    %81 = vector.broadcast %78 : vector<8x1x1xf32> to vector<8x32x8xf32>
    %82 = vector.broadcast %80 : vector<1x32x8xf32> to vector<8x32x8xf32>
    %83 = arith.mulf %81, %82 : vector<8x32x8xf32>
    %84 = arith.addf %76, %83 : vector<8x32x8xf32>
    %85 = vector.extract_strided_slice %33 {offsets = [0, 6], sizes = [8, 1], strides = [1, 1]} : vector<8x8xf32> to vector<8x1xf32>
    %86 = vector.shape_cast %85 : vector<8x1xf32> to vector<8x1x1xf32>
    %87 = vector.extract_strided_slice %32 {offsets = [192, 0], sizes = [32, 8], strides = [1, 1]} : vector<256x8xf32> to vector<32x8xf32>
    %88 = vector.shape_cast %87 : vector<32x8xf32> to vector<1x32x8xf32>
    %89 = vector.broadcast %86 : vector<8x1x1xf32> to vector<8x32x8xf32>
    %90 = vector.broadcast %88 : vector<1x32x8xf32> to vector<8x32x8xf32>
    %91 = arith.mulf %89, %90 : vector<8x32x8xf32>
    %92 = arith.addf %84, %91 : vector<8x32x8xf32>
    %93 = vector.extract_strided_slice %33 {offsets = [0, 7], sizes = [8, 1], strides = [1, 1]} : vector<8x8xf32> to vector<8x1xf32>
    %94 = vector.shape_cast %93 : vector<8x1xf32> to vector<8x1x1xf32>
    %95 = vector.extract_strided_slice %32 {offsets = [224, 0], sizes = [32, 8], strides = [1, 1]} : vector<256x8xf32> to vector<32x8xf32>
    %96 = vector.shape_cast %95 : vector<32x8xf32> to vector<1x32x8xf32>
    %97 = vector.broadcast %94 : vector<8x1x1xf32> to vector<8x32x8xf32>
    %98 = vector.broadcast %96 : vector<1x32x8xf32> to vector<8x32x8xf32>
    %99 = arith.mulf %97, %98 : vector<8x32x8xf32>
    %100 = arith.addf %92, %99 : vector<8x32x8xf32>
    %c0_16 = arith.constant 0 : index
    %c0_17 = arith.constant 0 : index
    %c0_18 = arith.constant 0 : index
    %c0_19 = arith.constant 0 : index
    %101 = vector.load %arg6[%c0_16, %c0_17, %c0_18, %c0_19] : memref<1x8x32x8xf32, #tpu.memory_space<vmem>>, vector<1x8x32x8xf32>
    %102 = vector.shape_cast %101 : vector<1x8x32x8xf32> to vector<8x32x8xf32>
    %103 = vector.shape_cast %100 : vector<8x32x8xf32> to vector<1x8x32x8xf32>
    tpu.vector_store %arg6[%c0_16, %c0_17, %c0_18, %c0_19], %103 {strides = array<i32>} : memref<1x8x32x8xf32, #tpu.memory_space<vmem>>, vector<1x8x32x8xf32>,
    return
  }
  func.func @transform_0(%arg0: i32) -> (i32, i32, i32) {
    %c0_i32 = arith.constant 0 : i32
    %c0_i32_0 = arith.constant 0 : i32
    %c0_i32_1 = arith.constant 0 : i32
    return %arg0, %c0_i32, %c0_i32_0 : i32, i32, i32
  }
  func.func @transform_1(%arg0: i32) -> (i32, i32, i32) {
    %c0_i32 = arith.constant 0 : i32
    %c0_i32_0 = arith.constant 0 : i32
    %c0_i32_1 = arith.constant 0 : i32
    return %arg0, %c0_i32, %c0_i32_0 : i32, i32, i32
  }
  func.func @transform_2(%arg0: i32) -> (i32, i32) {
    %c0_i32 = arith.constant 0 : i32
    %c0_i32_0 = arith.constant 0 : i32
    %c0_i32_1 = arith.constant 0 : i32
    return %c0_i32, %c0_i32_0 : i32, i32
  }
  func.func @transform_3(%arg0: i32) -> (i32, i32) {
    %c0_i32 = arith.constant 0 : i32
    %c0_i32_0 = arith.constant 0 : i32
    %c0_i32_1 = arith.constant 0 : i32
    return %c0_i32, %c0_i32_0 : i32, i32
  }
  func.func @transform_4(%arg0: i32) -> (i32, i32) {
    %c0_i32 = arith.constant 0 : i32
    %c0_i32_0 = arith.constant 0 : i32
    %c0_i32_1 = arith.constant 0 : i32
    return %c0_i32, %c0_i32_0 : i32, i32
  }
  func.func @transform_5(%arg0: i32) -> (i32, i32, i32, i32) {
    %c0_i32 = arith.constant 0 : i32
    %c0_i32_0 = arith.constant 0 : i32
    %c0_i32_1 = arith.constant 0 : i32
    %c0_i32_2 = arith.constant 0 : i32
    return %arg0, %c0_i32, %c0_i32_0, %c0_i32_1 : i32, i32, i32, i32
  }
}

</mosaic_0001>

<llo_original>
// kernel: channel_atten_1.1
$region0: #{channel_atten_1.1}
  #allocation0 [shape = 'u32[]', space=smem, size = 0x4, offset = 0x4, fixed_abs, tag = 'smem constant byte address 0x4 - core index']
  #allocation1 [shape = 'u32[144,128]{1,0:T(1,128)}', space=vmem, size = 0x12000, scoped, tag = 'internal scratch']
  %s0 = inlined_call_operand.vmem [shape: f32[2,8,1], index: 0, kind: input, shape index: {}]
  %s1 = inlined_call_operand.vmem [shape: f32[2,8,256], index: 1, kind: input, shape index: {}]
  %s2 = inlined_call_operand.vmem [shape: f32[24,8], index: 2, kind: input, shape index: {}]
  %s3 = inlined_call_operand.vmem [shape: f32[32,1], index: 3, kind: input, shape index: {}]
  %s4 = inlined_call_operand.vmem [shape: f32[8,8], index: 4, kind: input, shape index: {}]
  %s5 = inlined_call_operand.vmem [shape: f32[2,8,32,8], index: 5, kind: output, shape index: {}]
  %s6 = sld [smem:[#allocation0]]
  $region53: #{channel_atten_1.1} parent=0
    _
  %s8 = ssub.s32 1, %s6
  %s9 = scalar_select 0, %s8, %s6
  loop: start=0, step=1, limit=4
  $region2: #{channel_atten_1.1} parent=0 // loop_pre_header
    _
  $region3: #{channel_atten_1.1} parent=0 // loop_header
    %s11 = sphi 0, %s15
    %p12 = scmp.ge.s32.totalorder %s11, 4
    %s21 = sphi 0, %s23
    %s24 = sphi 0, %s21
    %s25 = sphi 0, %s24
    %s41 = sphi 0, %s25
    %s47 = sphi 0, %s49
    %s50 = sphi 0, %s47
    %s51 = sphi 0, %s50
    %s67 = sphi 0, %s51
    %s71 = sphi 0, %s71
    %s73 = sphi 0, %s71
    %s74 = sphi 0, %s73
    %s88 = sphi 0, %s74
    %s92 = sphi 0, %s92
    %s94 = sphi 0, %s92
    %s95 = sphi 0, %s94
    %s109 = sphi 0, %s95
    %s113 = sphi 0, %s113
    %s115 = sphi 0, %s113
    %s116 = sphi 0, %s115
    %s130 = sphi 0, %s116
    %s136 = sphi 0, %s138
    %s139 = sphi 0, %s136
    %s140 = sphi 0, %s139
    %s156 = sphi 0, %s140
  $region4: #{channel_atten_1.1} parent=0 // loop_header_branch
    %14 = sbr.rel (%p12) target = $region8
  $region5: #{channel_atten_1.1} parent=0 // loop_body
    %s16 = ssub.s32 %s11, 1
    %s17 = ssub.s32 %s11, 2
    %s18 = sadd.s32 %s11, 1
    %s19 = ssub.s32 %s11, %s18
    %p20 = scmp.eq.s32.totalorder %s19, 0
    %s22 = sadd.s32 %s21, 1
    %s23 = scalar_select %p20, %s21, %s22
    %p26 = pneg %p20
    %p27 = scmp.eq.s32.totalorder %s11, 1
    %p28 = por %p26, %p27
    %p29 = scmp.ne.s32.totalorder %s21, %s24
    %p30 = scmp.eq.s32.totalorder %s11, 0
    %p31 = por %p29, %p30
    %p32 = scmp.ne.s32.totalorder %s21, %s24
    %p33 = scmp.eq.s32.totalorder %s16, 1
    %p34 = por %p32, %p33
    %p35 = scmp.ne.s32.totalorder %s24, %s25
    %p36 = scmp.eq.s32.totalorder %s16, 0
    %p37 = por %p35, %p36
    %p38 = scmp.ne.s32.totalorder %s24, %s25
    %p39 = scmp.eq.s32.totalorder %s17, 1
    %p40 = por %p38, %p39
    %p42 = scmp.ne.s32.totalorder %s25, %s41
    %p43 = scmp.eq.s32.totalorder %s17, 0
    %p44 = por %p42, %p43
    %s45 = ssub.s32 %s11, %s18
    %p46 = scmp.eq.s32.totalorder %s45, 0
    %s48 = sadd.s32 %s47, 1
    %s49 = scalar_select %p46, %s47, %s48
    %p52 = pneg %p46
    %p53 = scmp.eq.s32.totalorder %s11, 1
    %p54 = por %p52, %p53
    %p55 = scmp.ne.s32.totalorder %s47, %s50
    %p56 = scmp.eq.s32.totalorder %s11, 0
    %p57 = por %p55, %p56
    %p58 = scmp.ne.s32.totalorder %s47, %s50
    %p59 = scmp.eq.s32.totalorder %s16, 1
    %p60 = por %p58, %p59
    %p61 = scmp.ne.s32.totalorder %s50, %s51
    %p62 = scmp.eq.s32.totalorder %s16, 0
    %p63 = por %p61, %p62
    %p64 = scmp.ne.s32.totalorder %s50, %s51
    %p65 = scmp.eq.s32.totalorder %s17, 1
    %p66 = por %p64, %p65
    %p68 = scmp.ne.s32.totalorder %s51, %s67
    %p69 = scmp.eq.s32.totalorder %s17, 0
    %p70 = por %p68, %p69
    %s72 = sadd.s32 %s71, 1
    %p75 = scmp.eq.s32.totalorder %s11, 1
    %p76 = scmp.ne.s32.totalorder %s71, %s73
    %p77 = scmp.eq.s32.totalorder %s11, 0
    %p78 = por %p76, %p77
    %p79 = scmp.ne.s32.totalorder %s71, %s73
    %p80 = scmp.eq.s32.totalorder %s16, 1
    %p81 = por %p79, %p80
    %p82 = scmp.ne.s32.totalorder %s73, %s74
    %p83 = scmp.eq.s32.totalorder %s16, 0
    %p84 = por %p82, %p83
    %p85 = scmp.ne.s32.totalorder %s73, %s74
    %p86 = scmp.eq.s32.totalorder %s17, 1
    %p87 = por %p85, %p86
    %p89 = scmp.ne.s32.totalorder %s74, %s88
    %p90 = scmp.eq.s32.totalorder %s17, 0
    %p91 = por %p89, %p90
    %s93 = sadd.s32 %s92, 1
    %p96 = scmp.eq.s32.totalorder %s11, 1
    %p97 = scmp.ne.s32.totalorder %s92, %s94
    %p98 = scmp.eq.s32.totalorder %s11, 0
    %p99 = por %p97, %p98
    %p100 = scmp.ne.s32.totalorder %s92, %s94
    %p101 = scmp.eq.s32.totalorder %s16, 1
    %p102 = por %p100, %p101
    %p103 = scmp.ne.s32.totalorder %s94, %s95
    %p104 = scmp.eq.s32.totalorder %s16, 0
    %p105 = por %p103, %p104
    %p106 = scmp.ne.s32.totalorder %s94, %s95
    %p107 = scmp.eq.s32.totalorder %s17, 1
    %p108 = por %p106, %p107
    %p110 = scmp.ne.s32.totalorder %s95, %s109
    %p111 = scmp.eq.s32.totalorder %s17, 0
    %p112 = por %p110, %p111
    %s114 = sadd.s32 %s113, 1
    %p117 = scmp.eq.s32.totalorder %s11, 1
    %p118 = scmp.ne.s32.totalorder %s113, %s115
    %p119 = scmp.eq.s32.totalorder %s11, 0
    %p120 = por %p118, %p119
    %p121 = scmp.ne.s32.totalorder %s113, %s115
    %p122 = scmp.eq.s32.totalorder %s16, 1
    %p123 = por %p121, %p122
    %p124 = scmp.ne.s32.totalorder %s115, %s116
    %p125 = scmp.eq.s32.totalorder %s16, 0
    %p126 = por %p124, %p125
    %p127 = scmp.ne.s32.totalorder %s115, %s116
    %p128 = scmp.eq.s32.totalorder %s17, 1
    %p129 = por %p127, %p128
    %p131 = scmp.ne.s32.totalorder %s116, %s130
    %p132 = scmp.eq.s32.totalorder %s17, 0
    %p133 = por %p131, %p132
    %s134 = ssub.s32 %s11, %s18
    %p135 = scmp.eq.s32.totalorder %s134, 0
    %s137 = sadd.s32 %s136, 1
    %s138 = scalar_select %p135, %s136, %s137
    %p141 = pneg %p135
    %p142 = scmp.eq.s32.totalorder %s11, 1
    %p143 = por %p141, %p142
    %p144 = scmp.ne.s32.totalorder %s136, %s139
    %p145 = scmp.eq.s32.totalorder %s11, 0
    %p146 = por %p144, %p145
    %p147 = scmp.ne.s32.totalorder %s136, %s139
    %p148 = scmp.eq.s32.totalorder %s16, 1
    %p149 = por %p147, %p148
    %p150 = scmp.ne.s32.totalorder %s139, %s140
    %p151 = scmp.eq.s32.totalorder %s16, 0
    %p152 = por %p150, %p151
    %p153 = scmp.ne.s32.totalorder %s139, %s140
    %p154 = scmp.eq.s32.totalorder %s17, 1
    %p155 = por %p153, %p154
    %p157 = scmp.ne.s32.totalorder %s140, %s156
    %p158 = scmp.eq.s32.totalorder %s17, 0
    %p159 = por %p157, %p158
    %p160 = scmp.le.s32.totalorder 1, %s11
    %p161 = scmp.lt.s32.totalorder %s11, 3
    %p162 = pnand %p160, %p161
    %p163 = pneg %p162
    // Predicated region
    $region9: #{channel_atten_1.1} parent=5 // pred_check
      _
    $region10: #{channel_atten_1.1} parent=5 // pred_check_branch
      %165 = sbr.rel (%p162) target = $region12
    $region11: #{channel_atten_1.1} parent=5 // pred_region
      %s166 = ssub.s32 %s11, 1
      // Predicated region
      $region13: #{channel_atten_1.1} parent=11 // pred_check
        %p167 = pneg %p84
      $region14: #{channel_atten_1.1} parent=11 // pred_check_branch
        %169 = sbr.rel (%p167) target = $region16
      $region15: #{channel_atten_1.1} parent=11 // pred_region
        _
      $region16: #{channel_atten_1.1} parent=11 // pred_fallthru
        _
      // Predicated region
      $region17: #{channel_atten_1.1} parent=11 // pred_check
        %p170 = pneg %p105
      $region18: #{channel_atten_1.1} parent=11 // pred_check_branch
        %172 = sbr.rel (%p170) target = $region20
      $region19: #{channel_atten_1.1} parent=11 // pred_region
        _
      $region20: #{channel_atten_1.1} parent=11 // pred_fallthru
        _
      // Predicated region
      $region21: #{channel_atten_1.1} parent=11 // pred_check
        %p173 = pneg %p126
      $region22: #{channel_atten_1.1} parent=11 // pred_check_branch
        %175 = sbr.rel (%p173) target = $region24
      $region23: #{channel_atten_1.1} parent=11 // pred_region
        _
      $region24: #{channel_atten_1.1} parent=11 // pred_fallthru
        _
    $region12: #{channel_atten_1.1} parent=5 // pred_fallthru
      _
    %p176 = scmp.lt.s32.totalorder %s11, 2
    // Predicated region
    $region25: #{channel_atten_1.1} parent=5 // pred_check
      %p177 = pneg %p176
    $region26: #{channel_atten_1.1} parent=5 // pred_check_branch
      %179 = sbr.rel (%p177) target = $region28
    $region27: #{channel_atten_1.1} parent=5 // pred_region
      // Predicated region
      $region29: #{channel_atten_1.1} parent=27 // pred_check
        %p180 = pneg %p31
      $region30: #{channel_atten_1.1} parent=27 // pred_check_branch
        %182 = sbr.rel (%p180) target = $region32
      $region31: #{channel_atten_1.1} parent=27 // pred_region
        %p183 = scmp.lt.s32.totalorder %s11, 1
        %s184 = scalar_select %p183, %s11, 1
        %s185 = smul.addr %s184, 8
        %s186 = scalar_lea.vmem %s0, %s185
      $region32: #{channel_atten_1.1} parent=27 // pred_fallthru
        _
      // Predicated region
      $region33: #{channel_atten_1.1} parent=27 // pred_check
        %p187 = pneg %p57
      $region34: #{channel_atten_1.1} parent=27 // pred_check_branch
        %189 = sbr.rel (%p187) target = $region36
      $region35: #{channel_atten_1.1} parent=27 // pred_region
        %p190 = scmp.lt.s32.totalorder %s11, 1
        %s191 = scalar_select %p190, %s11, 1
        %s192 = smul.addr %s191, 2
        %s193 = smul.addr %s192, 8
        %s194 = scalar_lea.vmem %s1, %s193
      $region36: #{channel_atten_1.1} parent=27 // pred_fallthru
        _
    $region28: #{channel_atten_1.1} parent=5 // pred_fallthru
      _
    %p195 = scmp.le.s32.totalorder 1, %s11
    %p196 = scmp.lt.s32.totalorder %s11, 3
    %p197 = pnand %p195, %p196
    %p198 = pneg %p197
    // Predicated region
    $region37: #{channel_atten_1.1} parent=5 // pred_check
      _
    $region38: #{channel_atten_1.1} parent=5 // pred_check_branch
      %200 = sbr.rel (%p197) target = $region40
    $region39: #{channel_atten_1.1} parent=5 // pred_region
      %s201 = ssub.s32 %s11, 1
      %p202 = scmp.lt.s32.totalorder %s16, 1
      %s203 = scalar_select %p202, %s16, 1
      %s204 = smul.addr %s203, 8
      %s205 = scalar_lea.vmem %s0, %s204
      %p206 = pneg %p37
      %p207 = pneg %p34
      %p208 = scmp.lt.s32.totalorder %s16, 1
      %s209 = scalar_select %p208, %s16, 1
      %s210 = smul.addr %s209, 2
      %s211 = smul.addr %s210, 8
      %s212 = scalar_lea.vmem %s1, %s211
      %p213 = pneg %p63
      %p214 = pneg %p60
      %p215 = pneg %p84
      %p216 = pneg %p81
      %p217 = pneg %p105
      %p218 = pneg %p102
      %p219 = pneg %p126
      %p220 = pneg %p123
      %p221 = pneg %p152
      %p222 = pneg %p149
      %p223 = scmp.lt.s32.totalorder %s16, 1
      %s224 = scalar_select %p223, %s16, 1
      %s225 = smul.addr %s224, 32
      %s226 = smul.addr %s225, 8
      %s227 = scalar_lea.vmem %s5, %s226
      %p228 = scmp.lt.s32.totalorder %s16, 1
      %s229 = scalar_select %p228, %s16, 1
      %s230 = smul.addr %s229, 8
      %s231 = scalar_lea.vmem %s0, %s230
      %p232 = scmp.lt.s32.totalorder %s16, 1
      %s233 = scalar_select %p232, %s16, 1
      %s234 = smul.addr %s233, 2
      %s235 = smul.addr %s234, 8
      %s236 = scalar_lea.vmem %s1, %s235
      %p237 = scmp.lt.s32.totalorder %s16, 1
      %s238 = scalar_select %p237, %s16, 1
      %s239 = smul.addr %s238, 32
      %s240 = smul.addr %s239, 8
      %s241 = scalar_lea.vmem %s5, %s240
      %v242 = vld [vmem:[%s231] sm:$0xff]
      %v243 = vld [vmem:[%s2] sm:$0xff]
      %v244 = vld [vmem:[%s2 + $0x8] sm:$0xff]
      %v245 = vld [vmem:[%s2 + $0x10] sm:$0xff]
      %v246 = vld [vmem:[%s3] sm:$0xff]
      %v247 = vld [vmem:[%s3 + $0x8] sm:$0xff]
      %v248 = vld [vmem:[%s3 + $0x10] sm:$0xff]
      %v249 = vld [vmem:[%s3 + $0x18] sm:$0xff]
      %vm250 = vcmask 64512
      %v252 = vsel %vm250, %v243, 0
      %v255 = vsel %vm250, %v244, 0
      %257 = vmatprep.subr.mxu0 0.0
      %258 = vmatpush1.msra.mxu0 %v242
      %259 = vmatprep.subr.mxu0 0.0
      %260 = vmatpush1.msra.mxu0 0.0
      %261 = vmatprep.subr.mxu0 0.0
      %262 = vmatpush1.msra.mxu0 0.0
      %263 = vmatprep.subr.mxu0 0.0
      %264 = vmatpush1.msra.mxu0 0.0
      %265 = vmatprep.subr.mxu0 0.0
      %266 = vmatpush1.msra.mxu0 0.0
      %267 = vmatprep.subr.mxu0 0.0
      %268 = vmatpush1.msra.mxu0 0.0
      %269 = vmatprep.subr.mxu0 0.0
      %270 = vmatpush1.msra.mxu0 0.0
      %271 = vmatprep.subr.mxu0 0.0
      %272 = vmatpush1.msra.mxu0 0.0
      %273 = vmatprep.subr.mxu0 0.0
      %274 = vmatpush1.msra.mxu0 0.0
      %275 = vmatprep.subr.mxu0 0.0
      %276 = vmatpush1.msra.mxu0 0.0
      %277 = vmatprep.subr.mxu0 0.0
      %278 = vmatpush1.msra.mxu0 0.0
      %279 = vmatprep.subr.mxu0 0.0
      %280 = vmatpush1.msra.mxu0 0.0
      %281 = vmatprep.subr.mxu0 0.0
      %282 = vmatpush1.msra.mxu0 0.0
      %283 = vmatprep.subr.mxu0 0.0
      %284 = vmatpush1.msra.mxu0 0.0
      %285 = vmatprep.subr.mxu0 0.0
      %286 = vmatpush1.msra.mxu0 0.0
      %287 = vmatprep.subr.mxu0 0.0
      %288 = vmatpush1.msra.mxu0 0.0
      %289 = vmatprep.subr.mxu0 0.0
      %290 = vmatpush1.msra.mxu0 0.0
      %291 = vmatprep.subr.mxu0 0.0
      %292 = vmatpush1.msra.mxu0 0.0
      %293 = vmatprep.subr.mxu0 0.0
      %294 = vmatpush1.msra.mxu0 0.0
      %295 = vmatprep.subr.mxu0 0.0
      %296 = vmatpush1.msra.mxu0 0.0
      %297 = vmatprep.subr.mxu0 0.0
      %298 = vmatpush1.msra.mxu0 0.0
      %299 = vmatprep.subr.mxu0 0.0
      %300 = vmatpush1.msra.mxu0 0.0
      %301 = vmatprep.subr.mxu0 0.0
      %302 = vmatpush1.msra.mxu0 0.0
      %303 = vmatprep.subr.mxu0 0.0
      %304 = vmatpush1.msra.mxu0 0.0
      %305 = vmatprep.subr.mxu0 0.0
      %306 = vmatpush1.msra.mxu0 0.0
      %307 = vmatprep.subr.mxu0 0.0
      %308 = vmatpush1.msra.mxu0 0.0
      %309 = vmatprep.subr.mxu0 0.0
      %310 = vmatpush1.msra.mxu0 0.0
      %311 = vmatprep.subr.mxu0 0.0
      %312 = vmatpush1.msra.mxu0 0.0
      %313 = vmatprep.subr.mxu0 0.0
      %314 = vmatpush1.msra.mxu0 0.0
      %315 = vmatprep.subr.mxu0 0.0
      %316 = vmatpush1.msra.mxu0 0.0
      %317 = vmatprep.subr.mxu0 0.0
      %318 = vmatpush1.msra.mxu0 0.0
      %319 = vmatprep.subr.mxu0 0.0
      %320 = vmatpush1.msra.mxu0 0.0
      %321 = vmatprep.mubr.f32.mxu0 0.0
      %322 = vmatmul.mubr.f32.gmra.mrb[0].mxu0 %v252
      %v323 = vpop.f32.mrb[0].mxu0
      %v324 = vadd.f32 %v246, %v323
      %v325 = vpop.f32.mrb[0].mxu0
      %326 = vmatprep.mubr.f32.mxu0 0.0
      %327 = vmatmul.mubr.f32.gmra.mrb[0].mxu0 %v255
      %v328 = vpop.f32.mrb[0].mxu0
      %v329 = vadd.f32 %v247, %v328
      %v330 = vpop.f32.mrb[0].mxu0
      %331 = vdwg.mxu0
      %332 = vxpose.xlu0.b32.start [1/16] %v324, 128
      %333 = vxpose.xlu0.b32.cont [2/16] 0.0, 128
      %334 = vxpose.xlu0.b32.cont [3/16] 0.0, 128
      %335 = vxpose.xlu0.b32.cont [4/16] 0.0, 128
      %336 = vxpose.xlu0.b32.cont [5/16] 0.0, 128
      %337 = vxpose.xlu0.b32.cont [6/16] 0.0, 128
      %338 = vxpose.xlu0.b32.cont [7/16] 0.0, 128
      %339 = vxpose.xlu0.b32.cont [8/16] 0.0, 128
      %340 = vxpose.xlu0.b32.cont [9/16] 0.0, 128
      %341 = vxpose.xlu0.b32.cont [10/16] 0.0, 128
      %342 = vxpose.xlu0.b32.cont [11/16] 0.0, 128
      %343 = vxpose.xlu0.b32.cont [12/16] 0.0, 128
      %344 = vxpose.xlu0.b32.cont [13/16] 0.0, 128
      %345 = vxpose.xlu0.b32.cont [14/16] 0.0, 128
      %346 = vxpose.xlu0.b32.cont [15/16] 0.0, 128
      %347 = vxpose.xlu0.b32.end [16/16] 0.0, 128
      %v348 = vpop.trf.xlu0
      %v349 = vpop.trf.xlu0
      %v350 = vpop.trf.xlu0
      %v351 = vpop.trf.xlu0
      %v352 = vpop.trf.xlu0
      %v353 = vpop.trf.xlu0
      %v354 = vpop.trf.xlu0
      %v355 = vpop.trf.xlu0
      %v356 = vpop.trf.xlu0
      %v357 = vpop.trf.xlu0
      %v358 = vpop.trf.xlu0
      %v359 = vpop.trf.xlu0
      %v360 = vpop.trf.xlu0
      %v361 = vpop.trf.xlu0
      %v362 = vpop.trf.xlu0
      %v363 = vpop.trf.xlu0
      %365 = vset.pattern.permute.xlu0 0
      %366 = vperm.xlu0 %365, %v329
      %v367 = vpop.permute.xlu0 %366
      %v369 = vlaneseq
      %v370 = vshrl.u32 %v369, 7
      %v371 = vsub.s32 0, %v370
      %v372 = vrot.slane %v348, %v371
      %v373 = vmul.f32 %v367, %v372
      %v374 = vsel %vm250, %v373, -inf
      %375 = vmax.xlane.f32.xlu0 %v374
      %v376 = vpop.xlane.xlu0 %375
      %v377 = vsub.f32 %v373, %v376
      %v378 = vmul.f32 %v377, 1.442695
      %v379 = vpow.pop %v378
      %v380 = vsel %vm250, %v379, 0.0
      %381 = vadd.xlane.f32.xlu0 %v380
      %v382 = vpop.xlane.xlu0 %381
      %v383 = vrcp.pop %v382
      %v384 = vmul.f32 %v379, %v383
      %385 = vxpose.xlu0.b32.start [1/16] %v384, 128
      %386 = vxpose.xlu0.b32.cont [2/16] 0.0, 128
      %387 = vxpose.xlu0.b32.cont [3/16] 0.0, 128
      %388 = vxpose.xlu0.b32.cont [4/16] 0.0, 128
      %389 = vxpose.xlu0.b32.cont [5/16] 0.0, 128
      %390 = vxpose.xlu0.b32.cont [6/16] 0.0, 128
      %391 = vxpose.xlu0.b32.cont [7/16] 0.0, 128
      %392 = vxpose.xlu0.b32.cont [8/16] 0.0, 128
      %393 = vxpose.xlu0.b32.cont [9/16] 0.0, 128
      %394 = vxpose.xlu0.b32.cont [10/16] 0.0, 128
      %395 = vxpose.xlu0.b32.cont [11/16] 0.0, 128
      %396 = vxpose.xlu0.b32.cont [12/16] 0.0, 128
      %397 = vxpose.xlu0.b32.cont [13/16] 0.0, 128
      %398 = vxpose.xlu0.b32.cont [14/16] 0.0, 128
      %399 = vxpose.xlu0.b32.cont [15/16] 0.0, 128
      %400 = vxpose.xlu0.b32.end [16/16] 0.0, 128
      %v401 = vpop.trf.xlu0
      %v402 = vpop.trf.xlu0
      %v403 = vpop.trf.xlu0
      %v404 = vpop.trf.xlu0
      %v405 = vpop.trf.xlu0
      %v406 = vpop.trf.xlu0
      %v407 = vpop.trf.xlu0
      %v408 = vpop.trf.xlu0
      %v409 = vpop.trf.xlu0
      %v410 = vpop.trf.xlu0
      %v411 = vpop.trf.xlu0
      %v412 = vpop.trf.xlu0
      %v413 = vpop.trf.xlu0
      %v414 = vpop.trf.xlu0
      %v415 = vpop.trf.xlu0
      %v416 = vpop.trf.xlu0
      %v418 = vsel %vm250, %v401, 0
      %420 = vmatprep.subr.mxu0 0.0
      %421 = vmatpush1.msra.mxu0 %v245
      %422 = vmatprep.subr.mxu0 0.0
      %423 = vmatpush1.msra.mxu0 0.0
      %424 = vmatprep.subr.mxu0 0.0
      %425 = vmatpush1.msra.mxu0 0.0
      %426 = vmatprep.subr.mxu0 0.0
      %427 = vmatpush1.msra.mxu0 0.0
      %428 = vmatprep.subr.mxu0 0.0
      %429 = vmatpush1.msra.mxu0 0.0
      %430 = vmatprep.subr.mxu0 0.0
      %431 = vmatpush1.msra.mxu0 0.0
      %432 = vmatprep.subr.mxu0 0.0
      %433 = vmatpush1.msra.mxu0 0.0
      %434 = vmatprep.subr.mxu0 0.0
      %435 = vmatpush1.msra.mxu0 0.0
      %436 = vmatprep.subr.mxu0 0.0
      %437 = vmatpush1.msra.mxu0 0.0
      %438 = vmatprep.subr.mxu0 0.0
      %439 = vmatpush1.msra.mxu0 0.0
      %440 = vmatprep.subr.mxu0 0.0
      %441 = vmatpush1.msra.mxu0 0.0
      %442 = vmatprep.subr.mxu0 0.0
      %443 = vmatpush1.msra.mxu0 0.0
      %444 = vmatprep.subr.mxu0 0.0
      %445 = vmatpush1.msra.mxu0 0.0
      %446 = vmatprep.subr.mxu0 0.0
      %447 = vmatpush1.msra.mxu0 0.0
      %448 = vmatprep.subr.mxu0 0.0
      %449 = vmatpush1.msra.mxu0 0.0
      %450 = vmatprep.subr.mxu0 0.0
      %451 = vmatpush1.msra.mxu0 0.0
      %452 = vmatprep.subr.mxu0 0.0
      %453 = vmatpush1.msra.mxu0 0.0
      %454 = vmatprep.subr.mxu0 0.0
      %455 = vmatpush1.msra.mxu0 0.0
      %456 = vmatprep.subr.mxu0 0.0
      %457 = vmatpush1.msra.mxu0 0.0
      %458 = vmatprep.subr.mxu0 0.0
      %459 = vmatpush1.msra.mxu0 0.0
      %460 = vmatprep.subr.mxu0 0.0
      %461 = vmatpush1.msra.mxu0 0.0
      %462 = vmatprep.subr.mxu0 0.0
      %463 = vmatpush1.msra.mxu0 0.0
      %464 = vmatprep.subr.mxu0 0.0
      %465 = vmatpush1.msra.mxu0 0.0
      %466 = vmatprep.subr.mxu0 0.0
      %467 = vmatpush1.msra.mxu0 0.0
      %468 = vmatprep.subr.mxu0 0.0
      %469 = vmatpush1.msra.mxu0 0.0
      %470 = vmatprep.subr.mxu0 0.0
      %471 = vmatpush1.msra.mxu0 0.0
      %472 = vmatprep.subr.mxu0 0.0
      %473 = vmatpush1.msra.mxu0 0.0
      %474 = vmatprep.subr.mxu0 0.0
      %475 = vmatpush1.msra.mxu0 0.0
      %476 = vmatprep.subr.mxu0 0.0
      %477 = vmatpush1.msra.mxu0 0.0
      %478 = vmatprep.subr.mxu0 0.0
      %479 = vmatpush1.msra.mxu0 0.0
      %480 = vmatprep.subr.mxu0 0.0
      %481 = vmatpush1.msra.mxu0 0.0
      %482 = vmatprep.subr.mxu0 0.0
      %483 = vmatpush1.msra.mxu0 0.0
      %484 = vmatprep.mubr.f32.mxu0 0.0
      %485 = vmatmul.mubr.f32.gmra.mrb[0].mxu0 %v418
      %v486 = vpop.f32.mrb[0].mxu0
      %v487 = vadd.f32 0.0, %v486
      %v488 = vpop.f32.mrb[0].mxu0
      %489 = vdwg.mxu0
      %490 = vmatprep.subr.mxu0 0.0
      %491 = vmatpush1.msra.mxu0 %v248
      %492 = vmatprep.subr.mxu0 0.0
      %493 = vmatpush1.msra.mxu0 0.0
      %494 = vmatprep.subr.mxu0 0.0
      %495 = vmatpush1.msra.mxu0 0.0
      %496 = vmatprep.subr.mxu0 0.0
      %497 = vmatpush1.msra.mxu0 0.0
      %498 = vmatprep.subr.mxu0 0.0
      %499 = vmatpush1.msra.mxu0 0.0
      %500 = vmatprep.subr.mxu0 0.0
      %501 = vmatpush1.msra.mxu0 0.0
      %502 = vmatprep.subr.mxu0 0.0
      %503 = vmatpush1.msra.mxu0 0.0
      %504 = vmatprep.subr.mxu0 0.0
      %505 = vmatpush1.msra.mxu0 0.0
      %506 = vmatprep.subr.mxu0 0.0
      %507 = vmatpush1.msra.mxu0 0.0
      %508 = vmatprep.subr.mxu0 0.0
      %509 = vmatpush1.msra.mxu0 0.0
      %510 = vmatprep.subr.mxu0 0.0
      %511 = vmatpush1.msra.mxu0 0.0
      %512 = vmatprep.subr.mxu0 0.0
      %513 = vmatpush1.msra.mxu0 0.0
      %514 = vmatprep.subr.mxu0 0.0
      %515 = vmatpush1.msra.mxu0 0.0
      %516 = vmatprep.subr.mxu0 0.0
      %517 = vmatpush1.msra.mxu0 0.0
      %518 = vmatprep.subr.mxu0 0.0
      %519 = vmatpush1.msra.mxu0 0.0
      %520 = vmatprep.subr.mxu0 0.0
      %521 = vmatpush1.msra.mxu0 0.0
      %522 = vmatprep.subr.mxu0 0.0
      %523 = vmatpush1.msra.mxu0 0.0
      %524 = vmatprep.subr.mxu0 0.0
      %525 = vmatpush1.msra.mxu0 0.0
      %526 = vmatprep.subr.mxu0 0.0
      %527 = vmatpush1.msra.mxu0 0.0
      %528 = vmatprep.subr.mxu0 0.0
      %529 = vmatpush1.msra.mxu0 0.0
      %530 = vmatprep.subr.mxu0 0.0
      %531 = vmatpush1.msra.mxu0 0.0
      %532 = vmatprep.subr.mxu0 0.0
      %533 = vmatpush1.msra.mxu0 0.0
      %534 = vmatprep.subr.mxu0 0.0
      %535 = vmatpush1.msra.mxu0 0.0
      %536 = vmatprep.subr.mxu0 0.0
      %537 = vmatpush1.msra.mxu0 0.0
      %538 = vmatprep.subr.mxu0 0.0
      %539 = vmatpush1.msra.mxu0 0.0
      %540 = vmatprep.subr.mxu0 0.0
      %541 = vmatpush1.msra.mxu0 0.0
      %542 = vmatprep.subr.mxu0 0.0
      %543 = vmatpush1.msra.mxu0 0.0
      %544 = vmatprep.subr.mxu0 0.0
      %545 = vmatpush1.msra.mxu0 0.0
      %546 = vmatprep.subr.mxu0 0.0
      %547 = vmatpush1.msra.mxu0 0.0
      %548 = vmatprep.subr.mxu0 0.0
      %549 = vmatpush1.msra.mxu0 0.0
      %550 = vmatprep.subr.mxu0 0.0
      %551 = vmatpush1.msra.mxu0 0.0
      %552 = vmatprep.subr.mxu0 0.0
      %553 = vmatpush1.msra.mxu0 0.0
      %554 = vmatprep.mubr.f32.mxu0 0.0
      %555 = vmatmul.mubr.f32.gmra.mrb[0].mxu0 %v418
      %v556 = vpop.f32.mrb[0].mxu0
      %v557 = vadd.f32 0.0, %v556
      %v558 = vpop.f32.mrb[0].mxu0
      %559 = vdwg.mxu0
      %v560 = vld [vmem:[%s236] sm:$0xff]
      %v561 = vld [vmem:[%s236 + $0x8] sm:$0xff]
      %563 = vset.pattern.permute.xlu0 0
      %564 = vperm.xlu0 %563, %v557
      %v565 = vpop.permute.xlu0 %564
      %v568 = vsel %vm250, %v487, 0
      %570 = vmatprep.subr.mxu0 %v561
      %571 = vmatpush1.msra.mxu0 %v560
      %572 = vmatprep.subr.mxu0 0.0
      %573 = vmatpush1.msra.mxu0 0.0
      %574 = vmatprep.subr.mxu0 0.0
      %575 = vmatpush1.msra.mxu0 0.0
      %576 = vmatprep.subr.mxu0 0.0
      %577 = vmatpush1.msra.mxu0 0.0
      %578 = vmatprep.subr.mxu0 0.0
      %579 = vmatpush1.msra.mxu0 0.0
      %580 = vmatprep.subr.mxu0 0.0
      %581 = vmatpush1.msra.mxu0 0.0
      %582 = vmatprep.subr.mxu0 0.0
      %583 = vmatpush1.msra.mxu0 0.0
      %584 = vmatprep.subr.mxu0 0.0
      %585 = vmatpush1.msra.mxu0 0.0
      %586 = vmatprep.subr.mxu0 0.0
      %587 = vmatpush1.msra.mxu0 0.0
      %588 = vmatprep.subr.mxu0 0.0
      %589 = vmatpush1.msra.mxu0 0.0
      %590 = vmatprep.subr.mxu0 0.0
      %591 = vmatpush1.msra.mxu0 0.0
      %592 = vmatprep.subr.mxu0 0.0
      %593 = vmatpush1.msra.mxu0 0.0
      %594 = vmatprep.subr.mxu0 0.0
      %595 = vmatpush1.msra.mxu0 0.0
      %596 = vmatprep.subr.mxu0 0.0
      %597 = vmatpush1.msra.mxu0 0.0
      %598 = vmatprep.subr.mxu0 0.0
      %599 = vmatpush1.msra.mxu0 0.0
      %600 = vmatprep.subr.mxu0 0.0
      %601 = vmatpush1.msra.mxu0 0.0
      %602 = vmatprep.subr.mxu0 0.0
      %603 = vmatpush1.msra.mxu0 0.0
      %604 = vmatprep.subr.mxu0 0.0
      %605 = vmatpush1.msra.mxu0 0.0
      %606 = vmatprep.subr.mxu0 0.0
      %607 = vmatpush1.msra.mxu0 0.0
      %608 = vmatprep.subr.mxu0 0.0
      %609 = vmatpush1.msra.mxu0 0.0
      %610 = vmatprep.subr.mxu0 0.0
      %611 = vmatpush1.msra.mxu0 0.0
      %612 = vmatprep.subr.mxu0 0.0
      %613 = vmatpush1.msra.mxu0 0.0
      %614 = vmatprep.subr.mxu0 0.0
      %615 = vmatpush1.msra.mxu0 0.0
      %616 = vmatprep.subr.mxu0 0.0
      %617 = vmatpush1.msra.mxu0 0.0
      %618 = vmatprep.subr.mxu0 0.0
      %619 = vmatpush1.msra.mxu0 0.0
      %620 = vmatprep.subr.mxu0 0.0
      %621 = vmatpush1.msra.mxu0 0.0
      %622 = vmatprep.subr.mxu0 0.0
      %623 = vmatpush1.msra.mxu0 0.0
      %624 = vmatprep.subr.mxu0 0.0
      %625 = vmatpush1.msra.mxu0 0.0
      %626 = vmatprep.subr.mxu0 0.0
      %627 = vmatpush1.msra.mxu0 0.0
      %628 = vmatprep.subr.mxu0 0.0
      %629 = vmatpush1.msra.mxu0 0.0
      %630 = vmatprep.subr.mxu0 0.0
      %631 = vmatpush1.msra.mxu0 0.0
      %632 = vmatprep.subr.mxu0 0.0
      %633 = vmatpush1.msra.mxu0 0.0
      %634 = vmatprep.mubr.f32.mxu0 0.0
      %635 = vmatmul.mubr.f32.gmra.mrb[0].mxu0 %v568
      %v636 = vpop.f32.mrb[0].mxu0
      %v637 = vadd.f32 %v565, %v636
      %v638 = vpop.f32.mrb[0].mxu0
      %v639 = vadd.f32 %v565, %v638
      %640 = vdwg.mxu0
      %641 = vxpose.xlu0.b32.start [1/16] %v637, 128
      %642 = vxpose.xlu0.b32.cont [2/16] 0.0, 128
      %643 = vxpose.xlu0.b32.cont [3/16] 0.0, 128
      %644 = vxpose.xlu0.b32.cont [4/16] 0.0, 128
      %645 = vxpose.xlu0.b32.cont [5/16] 0.0, 128
      %646 = vxpose.xlu0.b32.cont [6/16] 0.0, 128
      %647 = vxpose.xlu0.b32.cont [7/16] 0.0, 128
      %648 = vxpose.xlu0.b32.cont [8/16] 0.0, 128
      %649 = vxpose.xlu0.b32.cont [9/16] 0.0, 128
      %650 = vxpose.xlu0.b32.cont [10/16] 0.0, 128
      %651 = vxpose.xlu0.b32.cont [11/16] 0.0, 128
      %652 = vxpose.xlu0.b32.cont [12/16] 0.0, 128
      %653 = vxpose.xlu0.b32.cont [13/16] 0.0, 128
      %654 = vxpose.xlu0.b32.cont [14/16] 0.0, 128
      %655 = vxpose.xlu0.b32.cont [15/16] 0.0, 128
      %656 = vxpose.xlu0.b32.end [16/16] 0.0, 128
      %v657 = vpop.trf.xlu0
      %v658 = vpop.trf.xlu0
      %v659 = vpop.trf.xlu0
      %v660 = vpop.trf.xlu0
      %v661 = vpop.trf.xlu0
      %v662 = vpop.trf.xlu0
      %v663 = vpop.trf.xlu0
      %v664 = vpop.trf.xlu0
      %v665 = vpop.trf.xlu0
      %v666 = vpop.trf.xlu0
      %v667 = vpop.trf.xlu0
      %v668 = vpop.trf.xlu0
      %v669 = vpop.trf.xlu0
      %v670 = vpop.trf.xlu0
      %v671 = vpop.trf.xlu0
      %v672 = vpop.trf.xlu0
      %673 = vxpose.xlu0.b32.start [1/16] %v639, 128
      %674 = vxpose.xlu0.b32.cont [2/16] 0.0, 128
      %675 = vxpose.xlu0.b32.cont [3/16] 0.0, 128
      %676 = vxpose.xlu0.b32.cont [4/16] 0.0, 128
      %677 = vxpose.xlu0.b32.cont [5/16] 0.0, 128
      %678 = vxpose.xlu0.b32.cont [6/16] 0.0, 128
      %679 = vxpose.xlu0.b32.cont [7/16] 0.0, 128
      %680 = vxpose.xlu0.b32.cont [8/16] 0.0, 128
      %681 = vxpose.xlu0.b32.cont [9/16] 0.0, 128
      %682 = vxpose.xlu0.b32.cont [10/16] 0.0, 128
      %683 = vxpose.xlu0.b32.cont [11/16] 0.0, 128
      %684 = vxpose.xlu0.b32.cont [12/16] 0.0, 128
      %685 = vxpose.xlu0.b32.cont [13/16] 0.0, 128
      %686 = vxpose.xlu0.b32.cont [14/16] 0.0, 128
      %687 = vxpose.xlu0.b32.cont [15/16] 0.0, 128
      %688 = vxpose.xlu0.b32.end [16/16] 0.0, 128
      %v689 = vpop.trf.xlu0
      %v690 = vpop.trf.xlu0
      %v691 = vpop.trf.xlu0
      %v692 = vpop.trf.xlu0
      %v693 = vpop.trf.xlu0
      %v694 = vpop.trf.xlu0
      %v695 = vpop.trf.xlu0
      %v696 = vpop.trf.xlu0
      %v697 = vpop.trf.xlu0
      %v698 = vpop.trf.xlu0
      %v699 = vpop.trf.xlu0
      %v700 = vpop.trf.xlu0
      %v701 = vpop.trf.xlu0
      %v702 = vpop.trf.xlu0
      %v703 = vpop.trf.xlu0
      %v704 = vpop.trf.xlu0
      %v705 = vld [vmem:[%s4] sm:$0xff]
      %v707 = vcombine.high %v249, %v249
      %v709 = vunpack.c.l.s4 1966171168
      %v710 = vunpack.c.0.s8 %v709
      %v711 = vlaneseq
      %v712 = vshrl.u32 %v711, 7
      %v713 = vsub.s32 %v710, %v712
      %v714 = vrot.slane %v249, %v713
      %v716 = vunpack.c.l.s4 1966171168
      %v717 = vunpack.c.0.s8 %v716
      %v718 = vlaneseq
      %v719 = vshrl.u32 %v718, 7
      %v720 = vsub.s32 %v717, %v719
      %v721 = vrot.slane %v707, %v720
      %v722 = vcombine.high %v714, %v714
      %v723 = vcombine.high %v721, %v721
      %v725 = vunpack.c.l.s4 1966171168
      %v726 = vunpack.c.0.s8 %v725
      %v727 = vlaneseq
      %v728 = vshrl.u32 %v727, 7
      %v729 = vsub.s32 %v726, %v728
      %v730 = vrot.slane %v714, %v729
      %v732 = vunpack.c.l.s4 1966171168
      %v733 = vunpack.c.0.s8 %v732
      %v734 = vlaneseq
      %v735 = vshrl.u32 %v734, 7
      %v736 = vsub.s32 %v733, %v735
      %v737 = vrot.slane %v721, %v736
      %v739 = vunpack.c.l.s4 1966171168
      %v740 = vunpack.c.0.s8 %v739
      %v741 = vlaneseq
      %v742 = vshrl.u32 %v741, 7
      %v743 = vsub.s32 %v740, %v742
      %v744 = vrot.slane %v722, %v743
      %v746 = vunpack.c.l.s4 1966171168
      %v747 = vunpack.c.0.s8 %v746
      %v748 = vlaneseq
      %v749 = vshrl.u32 %v748, 7
      %v750 = vsub.s32 %v747, %v749
      %v751 = vrot.slane %v723, %v750
      %v752 = vcombine.high %v730, %v730
      %v753 = vcombine.high %v737, %v737
      %v754 = vcombine.high %v744, %v744
      %v755 = vcombine.high %v751, %v751
      %v757 = vcombine.high %v705, %v705
      %v759 = vunpack.c.l.s4 1966171168
      %v760 = vunpack.c.0.s8 %v759
      %v761 = vlaneseq
      %v762 = vshrl.u32 %v761, 7
      %v763 = vsub.s32 %v760, %v762
      %v764 = vrot.slane %v705, %v763
      %v766 = vunpack.c.l.s4 1966171168
      %v767 = vunpack.c.0.s8 %v766
      %v768 = vlaneseq
      %v769 = vshrl.u32 %v768, 7
      %v770 = vsub.s32 %v767, %v769
      %v771 = vrot.slane %v757, %v770
      %v772 = vcombine.high %v764, %v764
      %v773 = vcombine.high %v771, %v771
      %v775 = vunpack.c.l.s4 1966171168
      %v776 = vunpack.c.0.s8 %v775
      %v777 = vlaneseq
      %v778 = vshrl.u32 %v777, 7
      %v779 = vsub.s32 %v776, %v778
      %v780 = vrot.slane %v764, %v779
      %v782 = vunpack.c.l.s4 1966171168
      %v783 = vunpack.c.0.s8 %v782
      %v784 = vlaneseq
      %v785 = vshrl.u32 %v784, 7
      %v786 = vsub.s32 %v783, %v785
      %v787 = vrot.slane %v771, %v786
      %v789 = vunpack.c.l.s4 1966171168
      %v790 = vunpack.c.0.s8 %v789
      %v791 = vlaneseq
      %v792 = vshrl.u32 %v791, 7
      %v793 = vsub.s32 %v790, %v792
      %v794 = vrot.slane %v772, %v793
      %v796 = vunpack.c.l.s4 1966171168
      %v797 = vunpack.c.0.s8 %v796
      %v798 = vlaneseq
      %v799 = vshrl.u32 %v798, 7
      %v800 = vsub.s32 %v797, %v799
      %v801 = vrot.slane %v773, %v800
      %v802 = vcombine.high %v780, %v780
      %v803 = vcombine.high %v787, %v787
      %v804 = vcombine.high %v794, %v794
      %v805 = vcombine.high %v801, %v801
      %v806 = vlaneseq
      %v807 = vshrl.u32 %v806, 7
      %v808 = vsub.s32 0, %v807
      %v809 = vrot.slane %v780, %v808
      %v810 = vlaneseq
      %v811 = vshrl.u32 %v810, 7
      %v812 = vsub.s32 0, %v811
      %v813 = vrot.slane %v794, %v812
      %v814 = vlaneseq
      %v815 = vshrl.u32 %v814, 7
      %v816 = vsub.s32 0, %v815
      %v817 = vrot.slane %v802, %v816
      %v818 = vlaneseq
      %v819 = vshrl.u32 %v818, 7
      %v820 = vsub.s32 0, %v819
      %v821 = vrot.slane %v804, %v820
      %v822 = vlaneseq
      %v823 = vshrl.u32 %v822, 7
      %v824 = vsub.s32 0, %v823
      %v825 = vrot.slane %v787, %v824
      %v826 = vlaneseq
      %v827 = vshrl.u32 %v826, 7
      %v828 = vsub.s32 0, %v827
      %v829 = vrot.slane %v801, %v828
      %v830 = vlaneseq
      %v831 = vshrl.u32 %v830, 7
      %v832 = vsub.s32 0, %v831
      %v833 = vrot.slane %v803, %v832
      %v834 = vlaneseq
      %v835 = vshrl.u32 %v834, 7
      %v836 = vsub.s32 0, %v835
      %v837 = vrot.slane %v805, %v836
      %838 = vset.pattern.permute.xlu0 0
      %839 = vperm.xlu0 %838, %v809
      %v840 = vpop.permute.xlu0 %839
      %842 = vset.pattern.permute.xlu0 0
      %843 = vperm.xlu0 %842, %v813
      %v844 = vpop.permute.xlu0 %843
      %846 = vset.pattern.permute.xlu0 0
      %847 = vperm.xlu0 %846, %v817
      %v848 = vpop.permute.xlu0 %847
      %850 = vset.pattern.permute.xlu0 0
      %851 = vperm.xlu0 %850, %v821
      %v852 = vpop.permute.xlu0 %851
      %854 = vset.pattern.permute.xlu0 0
      %855 = vperm.xlu0 %854, %v825
      %v856 = vpop.permute.xlu0 %855
      %858 = vset.pattern.permute.xlu0 0
      %859 = vperm.xlu0 %858, %v829
      %v860 = vpop.permute.xlu0 %859
      %862 = vset.pattern.permute.xlu0 0
      %863 = vperm.xlu0 %862, %v833
      %v864 = vpop.permute.xlu0 %863
      %866 = vset.pattern.permute.xlu0 0
      %867 = vperm.xlu0 %866, %v837
      %v868 = vpop.permute.xlu0 %867
      %v870 = vmul.f32 %v840, %v657
      %v871 = vmul.f32 %v840, %v658
      %v872 = vmul.f32 %v840, %v659
      %v873 = vmul.f32 %v840, %v660
      %v874 = vmul.f32 %v844, %v657
      %v875 = vmul.f32 %v844, %v658
      %v876 = vmul.f32 %v844, %v659
      %v877 = vmul.f32 %v844, %v660
      %v878 = vmul.f32 %v848, %v657
      %v879 = vmul.f32 %v848, %v658
      %v880 = vmul.f32 %v848, %v659
      %v881 = vmul.f32 %v848, %v660
      %v882 = vmul.f32 %v852, %v657
      %v883 = vmul.f32 %v852, %v658
      %v884 = vmul.f32 %v852, %v659
      %v885 = vmul.f32 %v852, %v660
      %v886 = vmul.f32 %v856, %v657
      %v887 = vmul.f32 %v856, %v658
      %v888 = vmul.f32 %v856, %v659
      %v889 = vmul.f32 %v856, %v660
      %v890 = vmul.f32 %v860, %v657
      %v891 = vmul.f32 %v860, %v658
      %v892 = vmul.f32 %v860, %v659
      %v893 = vmul.f32 %v860, %v660
      %v894 = vmul.f32 %v864, %v657
      %v895 = vmul.f32 %v864, %v658
      %v896 = vmul.f32 %v864, %v659
      %v897 = vmul.f32 %v864, %v660
      %v898 = vmul.f32 %v868, %v657
      %v899 = vmul.f32 %v868, %v658
      %v900 = vmul.f32 %v868, %v659
      %v901 = vmul.f32 %v868, %v660
      %v902 = vlaneseq
      %v903 = vshrl.u32 %v902, 7
      %v904 = vsub.s32 0, %v903
      %v905 = vrot.slane %v730, %v904
      %v906 = vlaneseq
      %v907 = vshrl.u32 %v906, 7
      %v908 = vsub.s32 0, %v907
      %v909 = vrot.slane %v744, %v908
      %v910 = vlaneseq
      %v911 = vshrl.u32 %v910, 7
      %v912 = vsub.s32 0, %v911
      %v913 = vrot.slane %v752, %v912
      %v914 = vlaneseq
      %v915 = vshrl.u32 %v914, 7
      %v916 = vsub.s32 0, %v915
      %v917 = vrot.slane %v754, %v916
      %v918 = vlaneseq
      %v919 = vshrl.u32 %v918, 7
      %v920 = vsub.s32 0, %v919
      %v921 = vrot.slane %v737, %v920
      %v922 = vlaneseq
      %v923 = vshrl.u32 %v922, 7
      %v924 = vsub.s32 0, %v923
      %v925 = vrot.slane %v751, %v924
      %v926 = vlaneseq
      %v927 = vshrl.u32 %v926, 7
      %v928 = vsub.s32 0, %v927
      %v929 = vrot.slane %v753, %v928
      %v930 = vlaneseq
      %v931 = vshrl.u32 %v930, 7
      %v932 = vsub.s32 0, %v931
      %v933 = vrot.slane %v755, %v932
      %934 = vset.pattern.permute.xlu0 0
      %935 = vperm.xlu0 %934, %v905
      %v936 = vpop.permute.xlu0 %935
      %938 = vset.pattern.permute.xlu0 0
      %939 = vperm.xlu0 %938, %v909
      %v940 = vpop.permute.xlu0 %939
      %942 = vset.pattern.permute.xlu0 0
      %943 = vperm.xlu0 %942, %v913
      %v944 = vpop.permute.xlu0 %943
      %946 = vset.pattern.permute.xlu0 0
      %947 = vperm.xlu0 %946, %v917
      %v948 = vpop.permute.xlu0 %947
      %950 = vset.pattern.permute.xlu0 0
      %951 = vperm.xlu0 %950, %v921
      %v952 = vpop.permute.xlu0 %951
      %954 = vset.pattern.permute.xlu0 0
      %955 = vperm.xlu0 %954, %v925
      %v956 = vpop.permute.xlu0 %955
      %958 = vset.pattern.permute.xlu0 0
      %959 = vperm.xlu0 %958, %v929
      %v960 = vpop.permute.xlu0 %959
      %962 = vset.pattern.permute.xlu0 0
      %963 = vperm.xlu0 %962, %v933
      %v964 = vpop.permute.xlu0 %963
      %v966 = vadd.f32 %v936, %v870
      %v967 = vadd.f32 %v936, %v871
      %v968 = vadd.f32 %v936, %v872
      %v969 = vadd.f32 %v936, %v873
      %v970 = vadd.f32 %v940, %v874
      %v971 = vadd.f32 %v940, %v875
      %v972 = vadd.f32 %v940, %v876
      %v973 = vadd.f32 %v940, %v877
      %v974 = vadd.f32 %v944, %v878
      %v975 = vadd.f32 %v944, %v879
      %v976 = vadd.f32 %v944, %v880
      %v977 = vadd.f32 %v944, %v881
      %v978 = vadd.f32 %v948, %v882
      %v979 = vadd.f32 %v948, %v883
      %v980 = vadd.f32 %v948, %v884
      %v981 = vadd.f32 %v948, %v885
      %v982 = vadd.f32 %v952, %v886
      %v983 = vadd.f32 %v952, %v887
      %v984 = vadd.f32 %v952, %v888
      %v985 = vadd.f32 %v952, %v889
      %v986 = vadd.f32 %v956, %v890
      %v987 = vadd.f32 %v956, %v891
      %v988 = vadd.f32 %v956, %v892
      %v989 = vadd.f32 %v956, %v893
      %v990 = vadd.f32 %v960, %v894
      %v991 = vadd.f32 %v960, %v895
      %v992 = vadd.f32 %v960, %v896
      %v993 = vadd.f32 %v960, %v897
      %v994 = vadd.f32 %v964, %v898
      %v995 = vadd.f32 %v964, %v899
      %v996 = vadd.f32 %v964, %v900
      %v997 = vadd.f32 %v964, %v901
      %998 = vset.pattern.permute.xlu0 1
      %999 = vperm.xlu0 %998, %v809
      %v1000 = vpop.permute.xlu0 %999
      %1002 = vset.pattern.permute.xlu0 1
      %1003 = vperm.xlu0 %1002, %v813
      %v1004 = vpop.permute.xlu0 %1003
      %1006 = vset.pattern.permute.xlu0 1
      %1007 = vperm.xlu0 %1006, %v817
      %v1008 = vpop.permute.xlu0 %1007
      %1010 = vset.pattern.permute.xlu0 1
      %1011 = vperm.xlu0 %1010, %v821
      %v1012 = vpop.permute.xlu0 %1011
      %1014 = vset.pattern.permute.xlu0 1
      %1015 = vperm.xlu0 %1014, %v825
      %v1016 = vpop.permute.xlu0 %1015
      %1018 = vset.pattern.permute.xlu0 1
      %1019 = vperm.xlu0 %1018, %v829
      %v1020 = vpop.permute.xlu0 %1019
      %1022 = vset.pattern.permute.xlu0 1
      %1023 = vperm.xlu0 %1022, %v833
      %v1024 = vpop.permute.xlu0 %1023
      %1026 = vset.pattern.permute.xlu0 1
      %1027 = vperm.xlu0 %1026, %v837
      %v1028 = vpop.permute.xlu0 %1027
      %v1030 = vmul.f32 %v1000, %v661
      %v1031 = vmul.f32 %v1000, %v662
      %v1032 = vmul.f32 %v1000, %v663
      %v1033 = vmul.f32 %v1000, %v664
      %v1034 = vmul.f32 %v1004, %v661
      %v1035 = vmul.f32 %v1004, %v662
      %v1036 = vmul.f32 %v1004, %v663
      %v1037 = vmul.f32 %v1004, %v664
      %v1038 = vmul.f32 %v1008, %v661
      %v1039 = vmul.f32 %v1008, %v662
      %v1040 = vmul.f32 %v1008, %v663
      %v1041 = vmul.f32 %v1008, %v664
      %v1042 = vmul.f32 %v1012, %v661
      %v1043 = vmul.f32 %v1012, %v662
      %v1044 = vmul.f32 %v1012, %v663
      %v1045 = vmul.f32 %v1012, %v664
      %v1046 = vmul.f32 %v1016, %v661
      %v1047 = vmul.f32 %v1016, %v662
      %v1048 = vmul.f32 %v1016, %v663
      %v1049 = vmul.f32 %v1016, %v664
      %v1050 = vmul.f32 %v1020, %v661
      %v1051 = vmul.f32 %v1020, %v662
      %v1052 = vmul.f32 %v1020, %v663
      %v1053 = vmul.f32 %v1020, %v664
      %v1054 = vmul.f32 %v1024, %v661
      %v1055 = vmul.f32 %v1024, %v662
      %v1056 = vmul.f32 %v1024, %v663
      %v1057 = vmul.f32 %v1024, %v664
      %v1058 = vmul.f32 %v1028, %v661
      %v1059 = vmul.f32 %v1028, %v662
      %v1060 = vmul.f32 %v1028, %v663
      %v1061 = vmul.f32 %v1028, %v664
      %v1062 = vadd.f32 %v966, %v1030
      %v1063 = vadd.f32 %v967, %v1031
      %v1064 = vadd.f32 %v968, %v1032
      %v1065 = vadd.f32 %v969, %v1033
      %v1066 = vadd.f32 %v970, %v1034
      %v1067 = vadd.f32 %v971, %v1035
      %v1068 = vadd.f32 %v972, %v1036
      %v1069 = vadd.f32 %v973, %v1037
      %v1070 = vadd.f32 %v974, %v1038
      %v1071 = vadd.f32 %v975, %v1039
      %v1072 = vadd.f32 %v976, %v1040
      %v1073 = vadd.f32 %v977, %v1041
      %v1074 = vadd.f32 %v978, %v1042
      %v1075 = vadd.f32 %v979, %v1043
      %v1076 = vadd.f32 %v980, %v1044
      %v1077 = vadd.f32 %v981, %v1045
      %v1078 = vadd.f32 %v982, %v1046
      %v1079 = vadd.f32 %v983, %v1047
      %v1080 = vadd.f32 %v984, %v1048
      %v1081 = vadd.f32 %v985, %v1049
      %v1082 = vadd.f32 %v986, %v1050
      %v1083 = vadd.f32 %v987, %v1051
      %v1084 = vadd.f32 %v988, %v1052
      %v1085 = vadd.f32 %v989, %v1053
      %v1086 = vadd.f32 %v990, %v1054
      %v1087 = vadd.f32 %v991, %v1055
      %v1088 = vadd.f32 %v992, %v1056
      %v1089 = vadd.f32 %v993, %v1057
      %v1090 = vadd.f32 %v994, %v1058
      %v1091 = vadd.f32 %v995, %v1059
      %v1092 = vadd.f32 %v996, %v1060
      %v1093 = vadd.f32 %v997, %v1061
      %1094 = vset.pattern.permute.xlu0 2
      %1095 = vperm.xlu0 %1094, %v809
      %v1096 = vpop.permute.xlu0 %1095
      %1098 = vset.pattern.permute.xlu0 2
      %1099 = vperm.xlu0 %1098, %v813
      %v1100 = vpop.permute.xlu0 %1099
      %1102 = vset.pattern.permute.xlu0 2
      %1103 = vperm.xlu0 %1102, %v817
      %v1104 = vpop.permute.xlu0 %1103
      %1106 = vset.pattern.permute.xlu0 2
      %1107 = vperm.xlu0 %1106, %v821
      %v1108 = vpop.permute.xlu0 %1107
      %1110 = vset.pattern.permute.xlu0 2
      %1111 = vperm.xlu0 %1110, %v825
      %v1112 = vpop.permute.xlu0 %1111
      %1114 = vset.pattern.permute.xlu0 2
      %1115 = vperm.xlu0 %1114, %v829
      %v1116 = vpop.permute.xlu0 %1115
      %1118 = vset.pattern.permute.xlu0 2
      %1119 = vperm.xlu0 %1118, %v833
      %v1120 = vpop.permute.xlu0 %1119
      %1122 = vset.pattern.permute.xlu0 2
      %1123 = vperm.xlu0 %1122, %v837
      %v1124 = vpop.permute.xlu0 %1123
      %v1126 = vmul.f32 %v1096, %v665
      %v1127 = vmul.f32 %v1096, %v666
      %v1128 = vmul.f32 %v1096, %v667
      %v1129 = vmul.f32 %v1096, %v668
      %v1130 = vmul.f32 %v1100, %v665
      %v1131 = vmul.f32 %v1100, %v666
      %v1132 = vmul.f32 %v1100, %v667
      %v1133 = vmul.f32 %v1100, %v668
      %v1134 = vmul.f32 %v1104, %v665
      %v1135 = vmul.f32 %v1104, %v666
      %v1136 = vmul.f32 %v1104, %v667
      %v1137 = vmul.f32 %v1104, %v668
      %v1138 = vmul.f32 %v1108, %v665
      %v1139 = vmul.f32 %v1108, %v666
      %v1140 = vmul.f32 %v1108, %v667
      %v1141 = vmul.f32 %v1108, %v668
      %v1142 = vmul.f32 %v1112, %v665
      %v1143 = vmul.f32 %v1112, %v666
      %v1144 = vmul.f32 %v1112, %v667
      %v1145 = vmul.f32 %v1112, %v668
      %v1146 = vmul.f32 %v1116, %v665
      %v1147 = vmul.f32 %v1116, %v666
      %v1148 = vmul.f32 %v1116, %v667
      %v1149 = vmul.f32 %v1116, %v668
      %v1150 = vmul.f32 %v1120, %v665
      %v1151 = vmul.f32 %v1120, %v666
      %v1152 = vmul.f32 %v1120, %v667
      %v1153 = vmul.f32 %v1120, %v668
      %v1154 = vmul.f32 %v1124, %v665
      %v1155 = vmul.f32 %v1124, %v666
      %v1156 = vmul.f32 %v1124, %v667
      %v1157 = vmul.f32 %v1124, %v668
      %v1158 = vadd.f32 %v1062, %v1126
      %v1159 = vadd.f32 %v1063, %v1127
      %v1160 = vadd.f32 %v1064, %v1128
      %v1161 = vadd.f32 %v1065, %v1129
      %v1162 = vadd.f32 %v1066, %v1130
      %v1163 = vadd.f32 %v1067, %v1131
      %v1164 = vadd.f32 %v1068, %v1132
      %v1165 = vadd.f32 %v1069, %v1133
      %v1166 = vadd.f32 %v1070, %v1134
      %v1167 = vadd.f32 %v1071, %v1135
      %v1168 = vadd.f32 %v1072, %v1136
      %v1169 = vadd.f32 %v1073, %v1137
      %v1170 = vadd.f32 %v1074, %v1138
      %v1171 = vadd.f32 %v1075, %v1139
      %v1172 = vadd.f32 %v1076, %v1140
      %v1173 = vadd.f32 %v1077, %v1141
      %v1174 = vadd.f32 %v1078, %v1142
      %v1175 = vadd.f32 %v1079, %v1143
      %v1176 = vadd.f32 %v1080, %v1144
      %v1177 = vadd.f32 %v1081, %v1145
      %v1178 = vadd.f32 %v1082, %v1146
      %v1179 = vadd.f32 %v1083, %v1147
      %v1180 = vadd.f32 %v1084, %v1148
      %v1181 = vadd.f32 %v1085, %v1149
      %v1182 = vadd.f32 %v1086, %v1150
      %v1183 = vadd.f32 %v1087, %v1151
      %v1184 = vadd.f32 %v1088, %v1152
      %v1185 = vadd.f32 %v1089, %v1153
      %v1186 = vadd.f32 %v1090, %v1154
      %v1187 = vadd.f32 %v1091, %v1155
      %v1188 = vadd.f32 %v1092, %v1156
      %v1189 = vadd.f32 %v1093, %v1157
      %1190 = vset.pattern.permute.xlu0 3
      %1191 = vperm.xlu0 %1190, %v809
      %v1192 = vpop.permute.xlu0 %1191
      %1194 = vset.pattern.permute.xlu0 3
      %1195 = vperm.xlu0 %1194, %v813
      %v1196 = vpop.permute.xlu0 %1195
      %1198 = vset.pattern.permute.xlu0 3
      %1199 = vperm.xlu0 %1198, %v817
      %v1200 = vpop.permute.xlu0 %1199
      %1202 = vset.pattern.permute.xlu0 3
      %1203 = vperm.xlu0 %1202, %v821
      %v1204 = vpop.permute.xlu0 %1203
      %1206 = vset.pattern.permute.xlu0 3
      %1207 = vperm.xlu0 %1206, %v825
      %v1208 = vpop.permute.xlu0 %1207
      %1210 = vset.pattern.permute.xlu0 3
      %1211 = vperm.xlu0 %1210, %v829
      %v1212 = vpop.permute.xlu0 %1211
      %1214 = vset.pattern.permute.xlu0 3
      %1215 = vperm.xlu0 %1214, %v833
      %v1216 = vpop.permute.xlu0 %1215
      %1218 = vset.pattern.permute.xlu0 3
      %1219 = vperm.xlu0 %1218, %v837
      %v1220 = vpop.permute.xlu0 %1219
      %v1222 = vmul.f32 %v1192, %v669
      %v1223 = vmul.f32 %v1192, %v670
      %v1224 = vmul.f32 %v1192, %v671
      %v1225 = vmul.f32 %v1192, %v672
      %v1226 = vmul.f32 %v1196, %v669
      %v1227 = vmul.f32 %v1196, %v670
      %v1228 = vmul.f32 %v1196, %v671
      %v1229 = vmul.f32 %v1196, %v672
      %v1230 = vmul.f32 %v1200, %v669
      %v1231 = vmul.f32 %v1200, %v670
      %v1232 = vmul.f32 %v1200, %v671
      %v1233 = vmul.f32 %v1200, %v672
      %v1234 = vmul.f32 %v1204, %v669
      %v1235 = vmul.f32 %v1204, %v670
      %v1236 = vmul.f32 %v1204, %v671
      %v1237 = vmul.f32 %v1204, %v672
      %v1238 = vmul.f32 %v1208, %v669
      %v1239 = vmul.f32 %v1208, %v670
      %v1240 = vmul.f32 %v1208, %v671
      %v1241 = vmul.f32 %v1208, %v672
      %v1242 = vmul.f32 %v1212, %v669
      %v1243 = vmul.f32 %v1212, %v670
      %v1244 = vmul.f32 %v1212, %v671
      %v1245 = vmul.f32 %v1212, %v672
      %v1246 = vmul.f32 %v1216, %v669
      %v1247 = vmul.f32 %v1216, %v670
      %v1248 = vmul.f32 %v1216, %v671
      %v1249 = vmul.f32 %v1216, %v672
      %v1250 = vmul.f32 %v1220, %v669
      %v1251 = vmul.f32 %v1220, %v670
      %v1252 = vmul.f32 %v1220, %v671
      %v1253 = vmul.f32 %v1220, %v672
      %v1254 = vadd.f32 %v1158, %v1222
      %v1255 = vadd.f32 %v1159, %v1223
      %v1256 = vadd.f32 %v1160, %v1224
      %v1257 = vadd.f32 %v1161, %v1225
      %v1258 = vadd.f32 %v1162, %v1226
      %v1259 = vadd.f32 %v1163, %v1227
      %v1260 = vadd.f32 %v1164, %v1228
      %v1261 = vadd.f32 %v1165, %v1229
      %v1262 = vadd.f32 %v1166, %v1230
      %v1263 = vadd.f32 %v1167, %v1231
      %v1264 = vadd.f32 %v1168, %v1232
      %v1265 = vadd.f32 %v1169, %v1233
      %v1266 = vadd.f32 %v1170, %v1234
      %v1267 = vadd.f32 %v1171, %v1235
      %v1268 = vadd.f32 %v1172, %v1236
      %v1269 = vadd.f32 %v1173, %v1237
      %v1270 = vadd.f32 %v1174, %v1238
      %v1271 = vadd.f32 %v1175, %v1239
      %v1272 = vadd.f32 %v1176, %v1240
      %v1273 = vadd.f32 %v1177, %v1241
      %v1274 = vadd.f32 %v1178, %v1242
      %v1275 = vadd.f32 %v1179, %v1243
      %v1276 = vadd.f32 %v1180, %v1244
      %v1277 = vadd.f32 %v1181, %v1245
      %v1278 = vadd.f32 %v1182, %v1246
      %v1279 = vadd.f32 %v1183, %v1247
      %v1280 = vadd.f32 %v1184, %v1248
      %v1281 = vadd.f32 %v1185, %v1249
      %v1282 = vadd.f32 %v1186, %v1250
      %v1283 = vadd.f32 %v1187, %v1251
      %v1284 = vadd.f32 %v1188, %v1252
      %v1285 = vadd.f32 %v1189, %v1253
      %1286 = vset.pattern.permute.xlu0 4
      %1287 = vperm.xlu0 %1286, %v809
      %v1288 = vpop.permute.xlu0 %1287
      %1290 = vset.pattern.permute.xlu0 4
      %1291 = vperm.xlu0 %1290, %v813
      %v1292 = vpop.permute.xlu0 %1291
      %1294 = vset.pattern.permute.xlu0 4
      %1295 = vperm.xlu0 %1294, %v817
      %v1296 = vpop.permute.xlu0 %1295
      %1298 = vset.pattern.permute.xlu0 4
      %1299 = vperm.xlu0 %1298, %v821
      %v1300 = vpop.permute.xlu0 %1299
      %1302 = vset.pattern.permute.xlu0 4
      %1303 = vperm.xlu0 %1302, %v825
      %v1304 = vpop.permute.xlu0 %1303
      %1306 = vset.pattern.permute.xlu0 4
      %1307 = vperm.xlu0 %1306, %v829
      %v1308 = vpop.permute.xlu0 %1307
      %1310 = vset.pattern.permute.xlu0 4
      %1311 = vperm.xlu0 %1310, %v833
      %v1312 = vpop.permute.xlu0 %1311
      %1314 = vset.pattern.permute.xlu0 4
      %1315 = vperm.xlu0 %1314, %v837
      %v1316 = vpop.permute.xlu0 %1315
      %v1318 = vmul.f32 %v1288, %v689
      %v1319 = vmul.f32 %v1288, %v690
      %v1320 = vmul.f32 %v1288, %v691
      %v1321 = vmul.f32 %v1288, %v692
      %v1322 = vmul.f32 %v1292, %v689
      %v1323 = vmul.f32 %v1292, %v690
      %v1324 = vmul.f32 %v1292, %v691
      %v1325 = vmul.f32 %v1292, %v692
      %v1326 = vmul.f32 %v1296, %v689
      %v1327 = vmul.f32 %v1296, %v690
      %v1328 = vmul.f32 %v1296, %v691
      %v1329 = vmul.f32 %v1296, %v692
      %v1330 = vmul.f32 %v1300, %v689
      %v1331 = vmul.f32 %v1300, %v690
      %v1332 = vmul.f32 %v1300, %v691
      %v1333 = vmul.f32 %v1300, %v692
      %v1334 = vmul.f32 %v1304, %v689
      %v1335 = vmul.f32 %v1304, %v690
      %v1336 = vmul.f32 %v1304, %v691
      %v1337 = vmul.f32 %v1304, %v692
      %v1338 = vmul.f32 %v1308, %v689
      %v1339 = vmul.f32 %v1308, %v690
      %v1340 = vmul.f32 %v1308, %v691
      %v1341 = vmul.f32 %v1308, %v692
      %v1342 = vmul.f32 %v1312, %v689
      %v1343 = vmul.f32 %v1312, %v690
      %v1344 = vmul.f32 %v1312, %v691
      %v1345 = vmul.f32 %v1312, %v692
      %v1346 = vmul.f32 %v1316, %v689
      %v1347 = vmul.f32 %v1316, %v690
      %v1348 = vmul.f32 %v1316, %v691
      %v1349 = vmul.f32 %v1316, %v692
      %v1350 = vadd.f32 %v1254, %v1318
      %v1351 = vadd.f32 %v1255, %v1319
      %v1352 = vadd.f32 %v1256, %v1320
      %v1353 = vadd.f32 %v1257, %v1321
      %v1354 = vadd.f32 %v1258, %v1322
      %v1355 = vadd.f32 %v1259, %v1323
      %v1356 = vadd.f32 %v1260, %v1324
      %v1357 = vadd.f32 %v1261, %v1325
      %v1358 = vadd.f32 %v1262, %v1326
      %v1359 = vadd.f32 %v1263, %v1327
      %v1360 = vadd.f32 %v1264, %v1328
      %v1361 = vadd.f32 %v1265, %v1329
      %v1362 = vadd.f32 %v1266, %v1330
      %v1363 = vadd.f32 %v1267, %v1331
      %v1364 = vadd.f32 %v1268, %v1332
      %v1365 = vadd.f32 %v1269, %v1333
      %v1366 = vadd.f32 %v1270, %v1334
      %v1367 = vadd.f32 %v1271, %v1335
      %v1368 = vadd.f32 %v1272, %v1336
      %v1369 = vadd.f32 %v1273, %v1337
      %v1370 = vadd.f32 %v1274, %v1338
      %v1371 = vadd.f32 %v1275, %v1339
      %v1372 = vadd.f32 %v1276, %v1340
      %v1373 = vadd.f32 %v1277, %v1341
      %v1374 = vadd.f32 %v1278, %v1342
      %v1375 = vadd.f32 %v1279, %v1343
      %v1376 = vadd.f32 %v1280, %v1344
      %v1377 = vadd.f32 %v1281, %v1345
      %v1378 = vadd.f32 %v1282, %v1346
      %v1379 = vadd.f32 %v1283, %v1347
      %v1380 = vadd.f32 %v1284, %v1348
      %v1381 = vadd.f32 %v1285, %v1349
      %1382 = vset.pattern.permute.xlu0 5
      %1383 = vperm.xlu0 %1382, %v809
      %v1384 = vpop.permute.xlu0 %1383
      %1386 = vset.pattern.permute.xlu0 5
      %1387 = vperm.xlu0 %1386, %v813
      %v1388 = vpop.permute.xlu0 %1387
      %1390 = vset.pattern.permute.xlu0 5
      %1391 = vperm.xlu0 %1390, %v817
      %v1392 = vpop.permute.xlu0 %1391
      %1394 = vset.pattern.permute.xlu0 5
      %1395 = vperm.xlu0 %1394, %v821
      %v1396 = vpop.permute.xlu0 %1395
      %1398 = vset.pattern.permute.xlu0 5
      %1399 = vperm.xlu0 %1398, %v825
      %v1400 = vpop.permute.xlu0 %1399
      %1402 = vset.pattern.permute.xlu0 5
      %1403 = vperm.xlu0 %1402, %v829
      %v1404 = vpop.permute.xlu0 %1403
      %1406 = vset.pattern.permute.xlu0 5
      %1407 = vperm.xlu0 %1406, %v833
      %v1408 = vpop.permute.xlu0 %1407
      %1410 = vset.pattern.permute.xlu0 5
      %1411 = vperm.xlu0 %1410, %v837
      %v1412 = vpop.permute.xlu0 %1411
      %v1414 = vmul.f32 %v1384, %v693
      %v1415 = vmul.f32 %v1384, %v694
      %v1416 = vmul.f32 %v1384, %v695
      %v1417 = vmul.f32 %v1384, %v696
      %v1418 = vmul.f32 %v1388, %v693
      %v1419 = vmul.f32 %v1388, %v694
      %v1420 = vmul.f32 %v1388, %v695
      %v1421 = vmul.f32 %v1388, %v696
      %v1422 = vmul.f32 %v1392, %v693
      %v1423 = vmul.f32 %v1392, %v694
      %v1424 = vmul.f32 %v1392, %v695
      %v1425 = vmul.f32 %v1392, %v696
      %v1426 = vmul.f32 %v1396, %v693
      %v1427 = vmul.f32 %v1396, %v694
      %v1428 = vmul.f32 %v1396, %v695
      %v1429 = vmul.f32 %v1396, %v696
      %v1430 = vmul.f32 %v1400, %v693
      %v1431 = vmul.f32 %v1400, %v694
      %v1432 = vmul.f32 %v1400, %v695
      %v1433 = vmul.f32 %v1400, %v696
      %v1434 = vmul.f32 %v1404, %v693
      %v1435 = vmul.f32 %v1404, %v694
      %v1436 = vmul.f32 %v1404, %v695
      %v1437 = vmul.f32 %v1404, %v696
      %v1438 = vmul.f32 %v1408, %v693
      %v1439 = vmul.f32 %v1408, %v694
      %v1440 = vmul.f32 %v1408, %v695
      %v1441 = vmul.f32 %v1408, %v696
      %v1442 = vmul.f32 %v1412, %v693
      %v1443 = vmul.f32 %v1412, %v694
      %v1444 = vmul.f32 %v1412, %v695
      %v1445 = vmul.f32 %v1412, %v696
      %v1446 = vadd.f32 %v1350, %v1414
      %v1447 = vadd.f32 %v1351, %v1415
      %v1448 = vadd.f32 %v1352, %v1416
      %v1449 = vadd.f32 %v1353, %v1417
      %v1450 = vadd.f32 %v1354, %v1418
      %v1451 = vadd.f32 %v1355, %v1419
      %v1452 = vadd.f32 %v1356, %v1420
      %v1453 = vadd.f32 %v1357, %v1421
      %v1454 = vadd.f32 %v1358, %v1422
      %v1455 = vadd.f32 %v1359, %v1423
      %v1456 = vadd.f32 %v1360, %v1424
      %v1457 = vadd.f32 %v1361, %v1425
      %v1458 = vadd.f32 %v1362, %v1426
      %v1459 = vadd.f32 %v1363, %v1427
      %v1460 = vadd.f32 %v1364, %v1428
      %v1461 = vadd.f32 %v1365, %v1429
      %v1462 = vadd.f32 %v1366, %v1430
      %v1463 = vadd.f32 %v1367, %v1431
      %v1464 = vadd.f32 %v1368, %v1432
      %v1465 = vadd.f32 %v1369, %v1433
      %v1466 = vadd.f32 %v1370, %v1434
      %v1467 = vadd.f32 %v1371, %v1435
      %v1468 = vadd.f32 %v1372, %v1436
      %v1469 = vadd.f32 %v1373, %v1437
      %v1470 = vadd.f32 %v1374, %v1438
      %v1471 = vadd.f32 %v1375, %v1439
      %v1472 = vadd.f32 %v1376, %v1440
      %v1473 = vadd.f32 %v1377, %v1441
      %v1474 = vadd.f32 %v1378, %v1442
      %v1475 = vadd.f32 %v1379, %v1443
      %v1476 = vadd.f32 %v1380, %v1444
      %v1477 = vadd.f32 %v1381, %v1445
      %1478 = vset.pattern.permute.xlu0 6
      %1479 = vperm.xlu0 %1478, %v809
      %v1480 = vpop.permute.xlu0 %1479
      %1482 = vset.pattern.permute.xlu0 6
      %1483 = vperm.xlu0 %1482, %v813
      %v1484 = vpop.permute.xlu0 %1483
      %1486 = vset.pattern.permute.xlu0 6
      %1487 = vperm.xlu0 %1486, %v817
      %v1488 = vpop.permute.xlu0 %1487
      %1490 = vset.pattern.permute.xlu0 6
      %1491 = vperm.xlu0 %1490, %v821
      %v1492 = vpop.permute.xlu0 %1491
      %1494 = vset.pattern.permute.xlu0 6
      %1495 = vperm.xlu0 %1494, %v825
      %v1496 = vpop.permute.xlu0 %1495
      %1498 = vset.pattern.permute.xlu0 6
      %1499 = vperm.xlu0 %1498, %v829
      %v1500 = vpop.permute.xlu0 %1499
      %1502 = vset.pattern.permute.xlu0 6
      %1503 = vperm.xlu0 %1502, %v833
      %v1504 = vpop.permute.xlu0 %1503
      %1506 = vset.pattern.permute.xlu0 6
      %1507 = vperm.xlu0 %1506, %v837
      %v1508 = vpop.permute.xlu0 %1507
      %v1510 = vmul.f32 %v1480, %v697
      %v1511 = vmul.f32 %v1480, %v698
      %v1512 = vmul.f32 %v1480, %v699
      %v1513 = vmul.f32 %v1480, %v700
      %v1514 = vmul.f32 %v1484, %v697
      %v1515 = vmul.f32 %v1484, %v698
      %v1516 = vmul.f32 %v1484, %v699
      %v1517 = vmul.f32 %v1484, %v700
      %v1518 = vmul.f32 %v1488, %v697
      %v1519 = vmul.f32 %v1488, %v698
      %v1520 = vmul.f32 %v1488, %v699
      %v1521 = vmul.f32 %v1488, %v700
      %v1522 = vmul.f32 %v1492, %v697
      %v1523 = vmul.f32 %v1492, %v698
      %v1524 = vmul.f32 %v1492, %v699
      %v1525 = vmul.f32 %v1492, %v700
      %v1526 = vmul.f32 %v1496, %v697
      %v1527 = vmul.f32 %v1496, %v698
      %v1528 = vmul.f32 %v1496, %v699
      %v1529 = vmul.f32 %v1496, %v700
      %v1530 = vmul.f32 %v1500, %v697
      %v1531 = vmul.f32 %v1500, %v698
      %v1532 = vmul.f32 %v1500, %v699
      %v1533 = vmul.f32 %v1500, %v700
      %v1534 = vmul.f32 %v1504, %v697
      %v1535 = vmul.f32 %v1504, %v698
      %v1536 = vmul.f32 %v1504, %v699
      %v1537 = vmul.f32 %v1504, %v700
      %v1538 = vmul.f32 %v1508, %v697
      %v1539 = vmul.f32 %v1508, %v698
      %v1540 = vmul.f32 %v1508, %v699
      %v1541 = vmul.f32 %v1508, %v700
      %v1542 = vadd.f32 %v1446, %v1510
      %v1543 = vadd.f32 %v1447, %v1511
      %v1544 = vadd.f32 %v1448, %v1512
      %v1545 = vadd.f32 %v1449, %v1513
      %v1546 = vadd.f32 %v1450, %v1514
      %v1547 = vadd.f32 %v1451, %v1515
      %v1548 = vadd.f32 %v1452, %v1516
      %v1549 = vadd.f32 %v1453, %v1517
      %v1550 = vadd.f32 %v1454, %v1518
      %v1551 = vadd.f32 %v1455, %v1519
      %v1552 = vadd.f32 %v1456, %v1520
      %v1553 = vadd.f32 %v1457, %v1521
      %v1554 = vadd.f32 %v1458, %v1522
      %v1555 = vadd.f32 %v1459, %v1523
      %v1556 = vadd.f32 %v1460, %v1524
      %v1557 = vadd.f32 %v1461, %v1525
      %v1558 = vadd.f32 %v1462, %v1526
      %v1559 = vadd.f32 %v1463, %v1527
      %v1560 = vadd.f32 %v1464, %v1528
      %v1561 = vadd.f32 %v1465, %v1529
      %v1562 = vadd.f32 %v1466, %v1530
      %v1563 = vadd.f32 %v1467, %v1531
      %v1564 = vadd.f32 %v1468, %v1532
      %v1565 = vadd.f32 %v1469, %v1533
      %v1566 = vadd.f32 %v1470, %v1534
      %v1567 = vadd.f32 %v1471, %v1535
      %v1568 = vadd.f32 %v1472, %v1536
      %v1569 = vadd.f32 %v1473, %v1537
      %v1570 = vadd.f32 %v1474, %v1538
      %v1571 = vadd.f32 %v1475, %v1539
      %v1572 = vadd.f32 %v1476, %v1540
      %v1573 = vadd.f32 %v1477, %v1541
      %1574 = vset.pattern.permute.xlu0 7
      %1575 = vperm.xlu0 %1574, %v809
      %v1576 = vpop.permute.xlu0 %1575
      %1578 = vset.pattern.permute.xlu0 7
      %1579 = vperm.xlu0 %1578, %v813
      %v1580 = vpop.permute.xlu0 %1579
      %1582 = vset.pattern.permute.xlu0 7
      %1583 = vperm.xlu0 %1582, %v817
      %v1584 = vpop.permute.xlu0 %1583
      %1586 = vset.pattern.permute.xlu0 7
      %1587 = vperm.xlu0 %1586, %v821
      %v1588 = vpop.permute.xlu0 %1587
      %1590 = vset.pattern.permute.xlu0 7
      %1591 = vperm.xlu0 %1590, %v825
      %v1592 = vpop.permute.xlu0 %1591
      %1594 = vset.pattern.permute.xlu0 7
      %1595 = vperm.xlu0 %1594, %v829
      %v1596 = vpop.permute.xlu0 %1595
      %1598 = vset.pattern.permute.xlu0 7
      %1599 = vperm.xlu0 %1598, %v833
      %v1600 = vpop.permute.xlu0 %1599
      %1602 = vset.pattern.permute.xlu0 7
      %1603 = vperm.xlu0 %1602, %v837
      %v1604 = vpop.permute.xlu0 %1603
      %v1606 = vmul.f32 %v1576, %v701
      %v1607 = vmul.f32 %v1576, %v702
      %v1608 = vmul.f32 %v1576, %v703
      %v1609 = vmul.f32 %v1576, %v704
      %v1610 = vmul.f32 %v1580, %v701
      %v1611 = vmul.f32 %v1580, %v702
      %v1612 = vmul.f32 %v1580, %v703
      %v1613 = vmul.f32 %v1580, %v704
      %v1614 = vmul.f32 %v1584, %v701
      %v1615 = vmul.f32 %v1584, %v702
      %v1616 = vmul.f32 %v1584, %v703
      %v1617 = vmul.f32 %v1584, %v704
      %v1618 = vmul.f32 %v1588, %v701
      %v1619 = vmul.f32 %v1588, %v702
      %v1620 = vmul.f32 %v1588, %v703
      %v1621 = vmul.f32 %v1588, %v704
      %v1622 = vmul.f32 %v1592, %v701
      %v1623 = vmul.f32 %v1592, %v702
      %v1624 = vmul.f32 %v1592, %v703
      %v1625 = vmul.f32 %v1592, %v704
      %v1626 = vmul.f32 %v1596, %v701
      %v1627 = vmul.f32 %v1596, %v702
      %v1628 = vmul.f32 %v1596, %v703
      %v1629 = vmul.f32 %v1596, %v704
      %v1630 = vmul.f32 %v1600, %v701
      %v1631 = vmul.f32 %v1600, %v702
      %v1632 = vmul.f32 %v1600, %v703
      %v1633 = vmul.f32 %v1600, %v704
      %v1634 = vmul.f32 %v1604, %v701
      %v1635 = vmul.f32 %v1604, %v702
      %v1636 = vmul.f32 %v1604, %v703
      %v1637 = vmul.f32 %v1604, %v704
      %v1638 = vadd.f32 %v1542, %v1606
      %v1639 = vadd.f32 %v1543, %v1607
      %v1640 = vadd.f32 %v1544, %v1608
      %v1641 = vadd.f32 %v1545, %v1609
      %v1642 = vadd.f32 %v1546, %v1610
      %v1643 = vadd.f32 %v1547, %v1611
      %v1644 = vadd.f32 %v1548, %v1612
      %v1645 = vadd.f32 %v1549, %v1613
      %v1646 = vadd.f32 %v1550, %v1614
      %v1647 = vadd.f32 %v1551, %v1615
      %v1648 = vadd.f32 %v1552, %v1616
      %v1649 = vadd.f32 %v1553, %v1617
      %v1650 = vadd.f32 %v1554, %v1618
      %v1651 = vadd.f32 %v1555, %v1619
      %v1652 = vadd.f32 %v1556, %v1620
      %v1653 = vadd.f32 %v1557, %v1621
      %v1654 = vadd.f32 %v1558, %v1622
      %v1655 = vadd.f32 %v1559, %v1623
      %v1656 = vadd.f32 %v1560, %v1624
      %v1657 = vadd.f32 %v1561, %v1625
      %v1658 = vadd.f32 %v1562, %v1626
      %v1659 = vadd.f32 %v1563, %v1627
      %v1660 = vadd.f32 %v1564, %v1628
      %v1661 = vadd.f32 %v1565, %v1629
      %v1662 = vadd.f32 %v1566, %v1630
      %v1663 = vadd.f32 %v1567, %v1631
      %v1664 = vadd.f32 %v1568, %v1632
      %v1665 = vadd.f32 %v1569, %v1633
      %v1666 = vadd.f32 %v1570, %v1634
      %v1667 = vadd.f32 %v1571, %v1635
      %v1668 = vadd.f32 %v1572, %v1636
      %v1669 = vadd.f32 %v1573, %v1637
      %1670 = vst.msk [vmem:[%s241] sm:$0xff] %vm250, %v1638
      %1671 = vst.msk [vmem:[%s241 + $0x8] sm:$0xff] %vm250, %v1639
      %1672 = vst.msk [vmem:[%s241 + $0x10] sm:$0xff] %vm250, %v1640
      %1673 = vst.msk [vmem:[%s241 + $0x18] sm:$0xff] %vm250, %v1641
      %1674 = vst.msk [vmem:[%s241 + $0x20] sm:$0xff] %vm250, %v1642
      %1675 = vst.msk [vmem:[%s241 + $0x28] sm:$0xff] %vm250, %v1643
      %1676 = vst.msk [vmem:[%s241 + $0x30] sm:$0xff] %vm250, %v1644
      %1677 = vst.msk [vmem:[%s241 + $0x38] sm:$0xff] %vm250, %v1645
      %1678 = vst.msk [vmem:[%s241 + $0x40] sm:$0xff] %vm250, %v1646
      %1679 = vst.msk [vmem:[%s241 + $0x48] sm:$0xff] %vm250, %v1647
      %1680 = vst.msk [vmem:[%s241 + $0x50] sm:$0xff] %vm250, %v1648
      %1681 = vst.msk [vmem:[%s241 + $0x58] sm:$0xff] %vm250, %v1649
      %1682 = vst.msk [vmem:[%s241 + $0x60] sm:$0xff] %vm250, %v1650
      %1683 = vst.msk [vmem:[%s241 + $0x68] sm:$0xff] %vm250, %v1651
      %1684 = vst.msk [vmem:[%s241 + $0x70] sm:$0xff] %vm250, %v1652
      %1685 = vst.msk [vmem:[%s241 + $0x78] sm:$0xff] %vm250, %v1653
      %1686 = vst.msk [vmem:[%s241 + $0x80] sm:$0xff] %vm250, %v1654
      %1687 = vst.msk [vmem:[%s241 + $0x88] sm:$0xff] %vm250, %v1655
      %1688 = vst.msk [vmem:[%s241 + $0x90] sm:$0xff] %vm250, %v1656
      %1689 = vst.msk [vmem:[%s241 + $0x98] sm:$0xff] %vm250, %v1657
      %1690 = vst.msk [vmem:[%s241 + $0xa0] sm:$0xff] %vm250, %v1658
      %1691 = vst.msk [vmem:[%s241 + $0xa8] sm:$0xff] %vm250, %v1659
      %1692 = vst.msk [vmem:[%s241 + $0xb0] sm:$0xff] %vm250, %v1660
      %1693 = vst.msk [vmem:[%s241 + $0xb8] sm:$0xff] %vm250, %v1661
      %1694 = vst.msk [vmem:[%s241 + $0xc0] sm:$0xff] %vm250, %v1662
      %1695 = vst.msk [vmem:[%s241 + $0xc8] sm:$0xff] %vm250, %v1663
      %1696 = vst.msk [vmem:[%s241 + $0xd0] sm:$0xff] %vm250, %v1664
      %1697 = vst.msk [vmem:[%s241 + $0xd8] sm:$0xff] %vm250, %v1665
      %1698 = vst.msk [vmem:[%s241 + $0xe0] sm:$0xff] %vm250, %v1666
      %1699 = vst.msk [vmem:[%s241 + $0xe8] sm:$0xff] %vm250, %v1667
      %1700 = vst.msk [vmem:[%s241 + $0xf0] sm:$0xff] %vm250, %v1668
      %1701 = vst.msk [vmem:[%s241 + $0xf8] sm:$0xff] %vm250, %v1669
      %p1702 = scmp.lt.s32.totalorder %s16, 1
      %s1703 = scalar_select %p1702, %s16, 1
      %s1704 = smul.addr %s1703, 32
      %s1705 = smul.addr %s1704, 8
      %s1706 = scalar_lea.vmem %s5, %s1705
      // Predicated region
      $region41: #{channel_atten_1.1} parent=39 // pred_check
        %p1707 = pneg %p149
      $region42: #{channel_atten_1.1} parent=39 // pred_check_branch
        %1709 = sbr.rel (%p1707) target = $region44
      $region43: #{channel_atten_1.1} parent=39 // pred_region
        _
      $region44: #{channel_atten_1.1} parent=39 // pred_fallthru
        _
    $region40: #{channel_atten_1.1} parent=5 // pred_fallthru
      _
    %p1710 = scmp.le.s32.totalorder 2, %s11
    // Predicated region
    $region45: #{channel_atten_1.1} parent=5 // pred_check
      %p1711 = pneg %p1710
    $region46: #{channel_atten_1.1} parent=5 // pred_check_branch
      %1713 = sbr.rel (%p1711) target = $region48
    $region47: #{channel_atten_1.1} parent=5 // pred_region
      %s1714 = ssub.s32 %s11, 2
      // Predicated region
      $region49: #{channel_atten_1.1} parent=47 // pred_check
        %p1715 = pneg %p155
      $region50: #{channel_atten_1.1} parent=47 // pred_check_branch
        %1717 = sbr.rel (%p1715) target = $region52
      $region51: #{channel_atten_1.1} parent=47 // pred_region
        %p1718 = scmp.lt.s32.totalorder %s17, 1
        %s1719 = scalar_select %p1718, %s17, 1
        %s1720 = smul.addr %s1719, 32
        %s1721 = smul.addr %s1720, 8
        %s1722 = scalar_lea.vmem %s5, %s1721
      $region52: #{channel_atten_1.1} parent=47 // pred_fallthru
        _
    $region48: #{channel_atten_1.1} parent=5 // pred_fallthru
      _
  $region6: #{channel_atten_1.1} parent=0 // loop_footer
    %s15 = sadd.s32 1, %s11
  $region7: #{channel_atten_1.1} parent=0 // loop_footer_branch
    %10 = sbr.rel target = $region3
  $region8: #{channel_atten_1.1} parent=0 // loop_exit
    _

</llo_original>
